<compile_context>
chip_gen: v5e
topology: v5e:2x2
jax: 0.10.0
libtpu: 0.0.40
codegen_flags: <defaults>
</compile_context>

<pallas_src>
import jax
import jax.numpy as jnp
from jax.experimental import pallas as pl
from jax.experimental.pallas import tpu as pltpu


def _round_up(n, m):
    return ((n + m - 1) // m) * m


# ----------------------------- chip detection -------------------------------------

def _device_kind():
    try:
        d = jax.devices()[0]
        return d.device_kind.lower() if d.platform == "tpu" else ""
    except Exception:
        return ""


def _num_tensorcores(kind=None):
    kind = _device_kind() if kind is None else kind
    # v7x has 2 TensorCores per chip; v5e/v6e (and default) have 1.
    return 2 if "v7" in kind else 1


def _activation_dtype(kind=None):
    kind = _device_kind() if kind is None else kind
    # v6e/v7x have bf16-capable VPU/EUP; v5e and older do not -> keep f32 activations.
    return jnp.bfloat16 if ("v6" in kind or "v7" in kind) else jnp.float32


def _pick_batch_tile(B, num_tensorcores):
    # 1 grid step on single-TC chips, an even split across the 2 TCs on v7x.
    steps = max(1, num_tensorcores)
    bt = -(-B // steps)                # cdiv
    bt = _round_up(bt, 16)             # safe sublane multiple for f32/bf16 tiles
    bt = min(bt, 1024)                 # keep per-step intermediates comfortably in VMEM
    bt = min(bt, _round_up(B, 16))
    return max(bt, 16)


# ----------------------------- kernel ---------------------------------------------

def _encoder_kernel(x_ref, w1_ref, b1_ref, w2_ref, b2_ref, w3_ref, b3_ref, o_ref):
    act_dtype = b1_ref.dtype          # bf16 on v6e/v7x, f32 on v5e/other (set at prep time)
    mm_dtype = w1_ref.dtype           # bf16 (MXU-native)

    # In-kernel cast of the streamed x tile (free VPU op; avoids a wrapper astype launch).
    x = x_ref[...].astype(mm_dtype)

    # Hidden layer 1: tanh(x @ W1 + b1)   (MXU matmul, f32 accumulate)
    h = jnp.dot(x, w1_ref[...], preferred_element_type=jnp.float32)
    h = jnp.tanh(h.astype(act_dtype) + b1_ref[...])

    # Hidden layer 2: tanh(h @ W2 + b2)
    h = jnp.dot(h.astype(mm_dtype), w2_ref[...], preferred_element_type=jnp.float32)
    h = jnp.tanh(h.astype(act_dtype) + b2_ref[...])

    # Output layer (no activation); final bias-add kept in f32 for output precision.
    out = jnp.dot(h.astype(mm_dtype), w3_ref[...], preferred_element_type=jnp.float32)
    o_ref[...] = (out + b3_ref[...]).astype(o_ref.dtype)


# ----------------------------- parameter prep (one-time) --------------------------

def prepare_params(params_f32, *, act_dtype=jnp.float32):
    """One-time parameter prep (outside the hot path): bf16 matmul weights,
    activation-dtype hidden biases, f32 final bias."""
    w1, b1, w2, b2, w3, b3 = params_f32
    bf = jnp.bfloat16
    return (
        w1.astype(bf), b1.astype(act_dtype),
        w2.astype(bf), b2.astype(act_dtype),
        w3.astype(bf), b3.astype(jnp.float32),
    )


# ----------------------------- wrapper ---------------------------------------------

def categorical_encoder(x, prepared_params, *, batch_tile=None, num_tensorcores=None):
    """Fused 3-layer MLP forward. `prepared_params` must come from prepare_params()."""
    w1, b1, w2, b2, w3, b3 = prepared_params
    B, in_dim = x.shape
    h1, h2 = w1.shape[1], w2.shape[1]
    latent_dim = w3.shape[1]
    out_dtype = x.dtype

    if num_tensorcores is None:
        num_tensorcores = _num_tensorcores()
    if batch_tile is None:
        batch_tile = _pick_batch_tile(B, num_tensorcores)
    bt = int(batch_tile)
    grid = (pl.cdiv(B, bt),)

    full = lambda arr: pl.BlockSpec(arr.shape, lambda i: (0, 0))

    cost = pl.CostEstimate(
        flops=2 * B * (in_dim * h1 + h1 * h2 + h2 * latent_dim),
        transcendentals=B * (h1 + h2),
        bytes_accessed=(
            x.size * x.dtype.itemsize
            + B * latent_dim * jnp.dtype(out_dtype).itemsize
            + sum(a.size * a.dtype.itemsize for a in (w1, b1, w2, b2, w3, b3))
        ),
    )

    return pl.pallas_call(
        _encoder_kernel,
        out_shape=jax.ShapeDtypeStruct((B, latent_dim), out_dtype),
        grid_spec=pltpu.PrefetchScalarGridSpec(
            num_scalar_prefetch=0,
            grid=grid,
            in_specs=[
                pl.BlockSpec((bt, in_dim), lambda i: (i, 0)),   # streamed x tile
                full(w1), full(b1),
                full(w2), full(b2),
                full(w3), full(b3),
            ],
            out_specs=pl.BlockSpec((bt, latent_dim), lambda i: (i, 0)),
        ),
        compiler_params=pltpu.CompilerParams(
            dimension_semantics=("parallel",),       # shards batch tiles across TCs on v7x
            vmem_limit_bytes=32 * 1024 * 1024,
        ),
        cost_estimate=cost,
    )(x, w1, b1, w2, b2, w3, b3)


# ----------------------------- init + references -----------------------------------

def init_params(key, input_dim, latent_dim, hidden_sizes=(256, 128)):
    """Deterministic synthetic init (PyTorch-Linear-like uniform fan-in bound), f32."""
    sizes = [input_dim, *hidden_sizes, latent_dim]
    params = []
    for i in range(1, len(sizes)):
        fan_in, fan_out = sizes[i - 1], sizes[i]
        key, kw, kb = jax.random.split(key, 3)
        bound = 1.0 / jnp.sqrt(fan_in)
        # Stored as [in, out] (transposed relative to torch.nn.Linear.weight).
        w = jax.random.uniform(kw, (fan_in, fan_out), jnp.float32, -bound, bound)
        b = jax.random.uniform(kb, (1, fan_out), jnp.float32, -bound, bound)
        params.extend([w, b])
    return tuple(params)


def reference_forward_matched(x, params_f32, act_dtype):
    """Numerics-matched reference: mirrors the kernel's dtypes exactly
    (bf16 matmul operands, f32 accumulate, act_dtype bias-add/tanh, f32 final bias)."""
    w1, b1, w2, b2, w3, b3 = params_f32
    bf = jnp.bfloat16
    h = jnp.dot(x.astype(bf), w1.astype(bf), preferred_element_type=jnp.float32)
    h = jnp.tanh(h.astype(act_dtype) + b1.astype(act_dtype))
    h = jnp.dot(h.astype(bf), w2.astype(bf), preferred_element_type=jnp.float32)
    h = jnp.tanh(h.astype(act_dtype) + b2.astype(act_dtype))
    out = jnp.dot(h.astype(bf), w3.astype(bf), preferred_element_type=jnp.float32)
    return out + b3.astype(jnp.float32)


def reference_forward_f32(x, params_f32):
    """Pure-f32 module semantics (what the PyTorch module computes)."""
    w1, b1, w2, b2, w3, b3 = params_f32
    h = jnp.tanh(x @ w1 + b1)
    h = jnp.tanh(h @ w2 + b2)
    return h @ w3 + b3


if __name__ == "__main__":
    key = jax.random.PRNGKey(0)
    B, input_dim, latent_dim = 512, 32, 16
    hidden_sizes = (256, 128)                 # module defaults

    kx, kp = jax.random.split(key)
    x = jax.random.normal(kx, (B, input_dim), jnp.float32)
    params_f32 = init_params(kp, input_dim, latent_dim, hidden_sizes)

    kind = _device_kind()
    act_dtype = _activation_dtype(kind)
    prepared = prepare_params(params_f32, act_dtype=act_dtype)   # one-time prep, off hot path

    out = categorical_encoder(x, prepared)
    out = jax.block_until_ready(out)
    assert out.shape == (B, latent_dim)

    # Tight check against a reference that uses the exact same dtypes as the kernel.
    ref_matched = reference_forward_matched(x, params_f32, act_dtype)
    assert jnp.allclose(out, ref_matched, atol=2e-2, rtol=2e-2), "mismatch vs matched reference"

    # Looser sanity check against the pure-f32 module semantics (bf16 rounding only).
    ref_f32 = reference_forward_f32(x, params_f32)
    assert jnp.allclose(out, ref_f32, atol=8e-2, rtol=8e-2), "mismatch vs f32 reference"

    print("KERNEL_OK")
</pallas_src>

<mosaic_0001>
module attributes {stable_mosaic.version = 11 : i64} {
  func.func @_encoder_kernel(%arg0: i32, %arg1: memref<512x32xf32, #tpu.memory_space<vmem>>, %arg2: memref<32x256xbf16, #tpu.memory_space<vmem>>, %arg3: memref<1x256xf32, #tpu.memory_space<vmem>>, %arg4: memref<256x128xbf16, #tpu.memory_space<vmem>>, %arg5: memref<1x128xf32, #tpu.memory_space<vmem>>, %arg6: memref<128x16xbf16, #tpu.memory_space<vmem>>, %arg7: memref<1x16xf32, #tpu.memory_space<vmem>>, %arg8: memref<512x16xf32, #tpu.memory_space<vmem>>) attributes {dimension_semantics = [#tpu.dimension_semantics<parallel>], iteration_bounds = array<i64: 1>, scalar_prefetch = 0 : i64, scratch_operands = 0 : i64, tpu.core_type = #tpu.core_type<tc>, window_params = [{transform_indices = @transform_0, window_bounds = array<i64: 512, 32>}, {pipeline_mode = #tpu.pipeline_mode<synchronous>, transform_indices = @transform_1, window_bounds = array<i64: 32, 256>}, {pipeline_mode = #tpu.pipeline_mode<synchronous>, transform_indices = @transform_2, window_bounds = array<i64: 1, 256>}, {pipeline_mode = #tpu.pipeline_mode<synchronous>, transform_indices = @transform_3, window_bounds = array<i64: 256, 128>}, {pipeline_mode = #tpu.pipeline_mode<synchronous>, transform_indices = @transform_4, window_bounds = array<i64: 1, 128>}, {pipeline_mode = #tpu.pipeline_mode<synchronous>, transform_indices = @transform_5, window_bounds = array<i64: 128, 16>}, {pipeline_mode = #tpu.pipeline_mode<synchronous>, transform_indices = @transform_6, window_bounds = array<i64: 1, 16>}, {transform_indices = @transform_7, window_bounds = array<i64: 512, 16>}]} {
    %c0 = arith.constant 0 : index
    %c0_0 = arith.constant 0 : index
    %0 = vector.load %arg1[%c0, %c0_0] : memref<512x32xf32, #tpu.memory_space<vmem>>, vector<512x32xf32>
    %1 = arith.truncf %0 : vector<512x32xf32> to vector<512x32xbf16>
    %c0_1 = arith.constant 0 : index
    %c0_2 = arith.constant 0 : index
    %2 = vector.load %arg2[%c0_1, %c0_2] : memref<32x256xbf16, #tpu.memory_space<vmem>>, vector<32x256xbf16>
    %cst = arith.constant dense<0.000000e+00> : vector<512x256xf32>
    %3 = tpu.matmul %1, %2, %cst {dimension_numbers = #tpu.dot_dimension_numbers<[1], [0], [0], [1], [0, 0, 1, 1], [], []>} : vector<512x32xbf16>, vector<32x256xbf16>, vector<512x256xf32> -> vector<512x256xf32>
    %c0_3 = arith.constant 0 : index
    %c0_4 = arith.constant 0 : index
    %4 = vector.load %arg3[%c0_3, %c0_4] : memref<1x256xf32, #tpu.memory_space<vmem>>, vector<1x256xf32>
    %5 = vector.broadcast %4 : vector<1x256xf32> to vector<512x256xf32>
    %6 = arith.addf %3, %5 : vector<512x256xf32>
    %7 = math.tanh %6 : vector<512x256xf32>
    %8 = arith.truncf %7 : vector<512x256xf32> to vector<512x256xbf16>
    %c0_5 = arith.constant 0 : index
    %c0_6 = arith.constant 0 : index
    %9 = vector.load %arg4[%c0_5, %c0_6] : memref<256x128xbf16, #tpu.memory_space<vmem>>, vector<256x128xbf16>
    %cst_7 = arith.constant dense<0.000000e+00> : vector<512x128xf32>
    %10 = tpu.matmul %8, %9, %cst_7 {dimension_numbers = #tpu.dot_dimension_numbers<[1], [0], [0], [1], [0, 0, 1, 1], [], []>} : vector<512x256xbf16>, vector<256x128xbf16>, vector<512x128xf32> -> vector<512x128xf32>
    %c0_8 = arith.constant 0 : index
    %c0_9 = arith.constant 0 : index
    %11 = vector.load %arg5[%c0_8, %c0_9] : memref<1x128xf32, #tpu.memory_space<vmem>>, vector<1x128xf32>
    %12 = vector.broadcast %11 : vector<1x128xf32> to vector<512x128xf32>
    %13 = arith.addf %10, %12 : vector<512x128xf32>
    %14 = math.tanh %13 : vector<512x128xf32>
    %15 = arith.truncf %14 : vector<512x128xf32> to vector<512x128xbf16>
    %c0_10 = arith.constant 0 : index
    %c0_11 = arith.constant 0 : index
    %16 = vector.load %arg6[%c0_10, %c0_11] : memref<128x16xbf16, #tpu.memory_space<vmem>>, vector<128x16xbf16>
    %cst_12 = arith.constant dense<0.000000e+00> : vector<512x16xf32>
    %17 = tpu.matmul %15, %16, %cst_12 {dimension_numbers = #tpu.dot_dimension_numbers<[1], [0], [0], [1], [0, 0, 1, 1], [], []>} : vector<512x128xbf16>, vector<128x16xbf16>, vector<512x16xf32> -> vector<512x16xf32>
    %c0_13 = arith.constant 0 : index
    %c0_14 = arith.constant 0 : index
    %18 = vector.load %arg7[%c0_13, %c0_14] : memref<1x16xf32, #tpu.memory_space<vmem>>, vector<1x16xf32>
    %19 = vector.broadcast %18 : vector<1x16xf32> to vector<512x16xf32>
    %20 = arith.addf %17, %19 : vector<512x16xf32>
    %c0_15 = arith.constant 0 : index
    %c0_16 = arith.constant 0 : index
    %21 = vector.load %arg8[%c0_15, %c0_16] : memref<512x16xf32, #tpu.memory_space<vmem>>, vector<512x16xf32>
    tpu.vector_store %arg8[%c0_15, %c0_16], %20 {strides = array<i32>} : memref<512x16xf32, #tpu.memory_space<vmem>>, vector<512x16xf32>,
    return
  }
  func.func @transform_0(%arg0: i32) -> (i32, i32) {
    %c0_i32 = arith.constant 0 : i32
    %c0_i32_0 = arith.constant 0 : i32
    return %arg0, %c0_i32 : i32, i32
  }
  func.func @transform_1(%arg0: i32) -> (i32, i32) {
    %c0_i32 = arith.constant 0 : i32
    %c0_i32_0 = arith.constant 0 : i32
    %c0_i32_1 = arith.constant 0 : i32
    return %c0_i32, %c0_i32_0 : i32, i32
  }
  func.func @transform_2(%arg0: i32) -> (i32, i32) {
    %c0_i32 = arith.constant 0 : i32
    %c0_i32_0 = arith.constant 0 : i32
    %c0_i32_1 = arith.constant 0 : i32
    return %c0_i32, %c0_i32_0 : i32, i32
  }
  func.func @transform_3(%arg0: i32) -> (i32, i32) {
    %c0_i32 = arith.constant 0 : i32
    %c0_i32_0 = arith.constant 0 : i32
    %c0_i32_1 = arith.constant 0 : i32
    return %c0_i32, %c0_i32_0 : i32, i32
  }
  func.func @transform_4(%arg0: i32) -> (i32, i32) {
    %c0_i32 = arith.constant 0 : i32
    %c0_i32_0 = arith.constant 0 : i32
    %c0_i32_1 = arith.constant 0 : i32
    return %c0_i32, %c0_i32_0 : i32, i32
  }
  func.func @transform_5(%arg0: i32) -> (i32, i32) {
    %c0_i32 = arith.constant 0 : i32
    %c0_i32_0 = arith.constant 0 : i32
    %c0_i32_1 = arith.constant 0 : i32
    return %c0_i32, %c0_i32_0 : i32, i32
  }
  func.func @transform_6(%arg0: i32) -> (i32, i32) {
    %c0_i32 = arith.constant 0 : i32
    %c0_i32_0 = arith.constant 0 : i32
    %c0_i32_1 = arith.constant 0 : i32
    return %c0_i32, %c0_i32_0 : i32, i32
  }
  func.func @transform_7(%arg0: i32) -> (i32, i32) {
    %c0_i32 = arith.constant 0 : i32
    %c0_i32_0 = arith.constant 0 : i32
    return %arg0, %c0_i32 : i32, i32
  }
}

</mosaic_0001>

<llo_original>
// kernel: tpu_custom_call.1
$region0: #{tpu_custom_call.1}
  #allocation0 [shape = 'u32[]', space=smem, size = 0x4, offset = 0x4, fixed_abs, tag = 'smem constant byte address 0x4 - core index']
  #allocation1 [shape = 'u32[72,128]{1,0:T(1,128)}', space=vmem, size = 0x9000, scoped, tag = 'internal scratch']
  %s0 = inlined_call_operand.vmem [shape: f32[512,32], index: 0, kind: input, shape index: {}]
  %s1 = inlined_call_operand.vmem [shape: bf16[32,256], index: 1, kind: input, shape index: {}]
  %s2 = inlined_call_operand.vmem [shape: f32[1,256], index: 2, kind: input, shape index: {}]
  %s3 = inlined_call_operand.vmem [shape: bf16[256,128], index: 3, kind: input, shape index: {}]
  %s4 = inlined_call_operand.vmem [shape: f32[1,128], index: 4, kind: input, shape index: {}]
  %s5 = inlined_call_operand.vmem [shape: bf16[128,16], index: 5, kind: input, shape index: {}]
  %s6 = inlined_call_operand.vmem [shape: f32[1,16], index: 6, kind: input, shape index: {}]
  %s7 = inlined_call_operand.vmem [shape: f32[512,16], index: 7, kind: output, shape index: {}]
  %s8 = sld [smem:[#allocation0]]
  $region38: #{tpu_custom_call.1} parent=0
    _
  %s10 = ssub.s32 1, %s8
  %s11 = scalar_select 0, %s10, %s8
  // Predicated region
  $region2: #{tpu_custom_call.1} parent=0 // pred_check
    _
  $region3: #{tpu_custom_call.1} parent=0 // pred_check_branch
    %13 = sbr.rel (0) target = $region5
  $region4: #{tpu_custom_call.1} parent=0 // pred_region
    _
  $region5: #{tpu_custom_call.1} parent=0 // pred_fallthru
    _
  // Predicated region
  $region6: #{tpu_custom_call.1} parent=0 // pred_check
    _
  $region7: #{tpu_custom_call.1} parent=0 // pred_check_branch
    %15 = sbr.rel (0) target = $region9
  $region8: #{tpu_custom_call.1} parent=0 // pred_region
    _
  $region9: #{tpu_custom_call.1} parent=0 // pred_fallthru
    _
  // Predicated region
  $region10: #{tpu_custom_call.1} parent=0 // pred_check
    _
  $region11: #{tpu_custom_call.1} parent=0 // pred_check_branch
    %17 = sbr.rel (0) target = $region13
  $region12: #{tpu_custom_call.1} parent=0 // pred_region
    _
  $region13: #{tpu_custom_call.1} parent=0 // pred_fallthru
    _
  // Predicated region
  $region14: #{tpu_custom_call.1} parent=0 // pred_check
    _
  $region15: #{tpu_custom_call.1} parent=0 // pred_check_branch
    %19 = sbr.rel (0) target = $region17
  $region16: #{tpu_custom_call.1} parent=0 // pred_region
    _
  $region17: #{tpu_custom_call.1} parent=0 // pred_fallthru
    _
  // Predicated region
  $region18: #{tpu_custom_call.1} parent=0 // pred_check
    _
  $region19: #{tpu_custom_call.1} parent=0 // pred_check_branch
    %21 = sbr.rel (0) target = $region21
  $region20: #{tpu_custom_call.1} parent=0 // pred_region
    _
  $region21: #{tpu_custom_call.1} parent=0 // pred_fallthru
    _
  // Predicated region
  $region22: #{tpu_custom_call.1} parent=0 // pred_check
    _
  $region23: #{tpu_custom_call.1} parent=0 // pred_check_branch
    %23 = sbr.rel (0) target = $region25
  $region24: #{tpu_custom_call.1} parent=0 // pred_region
    _
  $region25: #{tpu_custom_call.1} parent=0 // pred_fallthru
    _
  // Predicated region
  $region26: #{tpu_custom_call.1} parent=0 // pred_check
    _
  $region27: #{tpu_custom_call.1} parent=0 // pred_check_branch
    %25 = sbr.rel (0) target = $region29
  $region28: #{tpu_custom_call.1} parent=0 // pred_region
    _
  $region29: #{tpu_custom_call.1} parent=0 // pred_fallthru
    _
  %v27 = vld [vmem:[%s0] sm:$0xff]
  %v28 = vld [vmem:[%s0 + $0x8] sm:$0xff]
  %v29 = vld [vmem:[%s0 + $0x10] sm:$0xff]
  %v30 = vld [vmem:[%s0 + $0x18] sm:$0xff]
  %v31 = vld [vmem:[%s0 + $0x20] sm:$0xff]
  %v32 = vld [vmem:[%s0 + $0x28] sm:$0xff]
  %v33 = vld [vmem:[%s0 + $0x30] sm:$0xff]
  %v34 = vld [vmem:[%s0 + $0x38] sm:$0xff]
  %v35 = vld [vmem:[%s0 + $0x40] sm:$0xff]
  %v36 = vld [vmem:[%s0 + $0x48] sm:$0xff]
  %v37 = vld [vmem:[%s0 + $0x50] sm:$0xff]
  %v38 = vld [vmem:[%s0 + $0x58] sm:$0xff]
  %v39 = vld [vmem:[%s0 + $0x60] sm:$0xff]
  %v40 = vld [vmem:[%s0 + $0x68] sm:$0xff]
  %v41 = vld [vmem:[%s0 + $0x70] sm:$0xff]
  %v42 = vld [vmem:[%s0 + $0x78] sm:$0xff]
  %v43 = vld [vmem:[%s0 + $0x80] sm:$0xff]
  %v44 = vld [vmem:[%s0 + $0x88] sm:$0xff]
  %v45 = vld [vmem:[%s0 + $0x90] sm:$0xff]
  %v46 = vld [vmem:[%s0 + $0x98] sm:$0xff]
  %v47 = vld [vmem:[%s0 + $0xa0] sm:$0xff]
  %v48 = vld [vmem:[%s0 + $0xa8] sm:$0xff]
  %v49 = vld [vmem:[%s0 + $0xb0] sm:$0xff]
  %v50 = vld [vmem:[%s0 + $0xb8] sm:$0xff]
  %v51 = vld [vmem:[%s0 + $0xc0] sm:$0xff]
  %v52 = vld [vmem:[%s0 + $0xc8] sm:$0xff]
  %v53 = vld [vmem:[%s0 + $0xd0] sm:$0xff]
  %v54 = vld [vmem:[%s0 + $0xd8] sm:$0xff]
  %v55 = vld [vmem:[%s0 + $0xe0] sm:$0xff]
  %v56 = vld [vmem:[%s0 + $0xe8] sm:$0xff]
  %v57 = vld [vmem:[%s0 + $0xf0] sm:$0xff]
  %v58 = vld [vmem:[%s0 + $0xf8] sm:$0xff]
  %v59 = vld [vmem:[%s0 + $0x100] sm:$0xff]
  %v60 = vld [vmem:[%s0 + $0x108] sm:$0xff]
  %v61 = vld [vmem:[%s0 + $0x110] sm:$0xff]
  %v62 = vld [vmem:[%s0 + $0x118] sm:$0xff]
  %v63 = vld [vmem:[%s0 + $0x120] sm:$0xff]
  %v64 = vld [vmem:[%s0 + $0x128] sm:$0xff]
  %v65 = vld [vmem:[%s0 + $0x130] sm:$0xff]
  %v66 = vld [vmem:[%s0 + $0x138] sm:$0xff]
  %v67 = vld [vmem:[%s0 + $0x140] sm:$0xff]
  %v68 = vld [vmem:[%s0 + $0x148] sm:$0xff]
  %v69 = vld [vmem:[%s0 + $0x150] sm:$0xff]
  %v70 = vld [vmem:[%s0 + $0x158] sm:$0xff]
  %v71 = vld [vmem:[%s0 + $0x160] sm:$0xff]
  %v72 = vld [vmem:[%s0 + $0x168] sm:$0xff]
  %v73 = vld [vmem:[%s0 + $0x170] sm:$0xff]
  %v74 = vld [vmem:[%s0 + $0x178] sm:$0xff]
  %v75 = vld [vmem:[%s0 + $0x180] sm:$0xff]
  %v76 = vld [vmem:[%s0 + $0x188] sm:$0xff]
  %v77 = vld [vmem:[%s0 + $0x190] sm:$0xff]
  %v78 = vld [vmem:[%s0 + $0x198] sm:$0xff]
  %v79 = vld [vmem:[%s0 + $0x1a0] sm:$0xff]
  %v80 = vld [vmem:[%s0 + $0x1a8] sm:$0xff]
  %v81 = vld [vmem:[%s0 + $0x1b0] sm:$0xff]
  %v82 = vld [vmem:[%s0 + $0x1b8] sm:$0xff]
  %v83 = vld [vmem:[%s0 + $0x1c0] sm:$0xff]
  %v84 = vld [vmem:[%s0 + $0x1c8] sm:$0xff]
  %v85 = vld [vmem:[%s0 + $0x1d0] sm:$0xff]
  %v86 = vld [vmem:[%s0 + $0x1d8] sm:$0xff]
  %v87 = vld [vmem:[%s0 + $0x1e0] sm:$0xff]
  %v88 = vld [vmem:[%s0 + $0x1e8] sm:$0xff]
  %v89 = vld [vmem:[%s0 + $0x1f0] sm:$0xff]
  %v90 = vld [vmem:[%s0 + $0x1f8] sm:$0xff]
  %v91 = vpack.c.bf16 %v28, %v27
  %v92 = vpack.c.bf16 %v30, %v29
  %v93 = vpack.c.bf16 %v32, %v31
  %v94 = vpack.c.bf16 %v34, %v33
  %v95 = vpack.c.bf16 %v36, %v35
  %v96 = vpack.c.bf16 %v38, %v37
  %v97 = vpack.c.bf16 %v40, %v39
  %v98 = vpack.c.bf16 %v42, %v41
  %v99 = vpack.c.bf16 %v44, %v43
  %v100 = vpack.c.bf16 %v46, %v45
  %v101 = vpack.c.bf16 %v48, %v47
  %v102 = vpack.c.bf16 %v50, %v49
  %v103 = vpack.c.bf16 %v52, %v51
  %v104 = vpack.c.bf16 %v54, %v53
  %v105 = vpack.c.bf16 %v56, %v55
  %v106 = vpack.c.bf16 %v58, %v57
  %v107 = vpack.c.bf16 %v60, %v59
  %v108 = vpack.c.bf16 %v62, %v61
  %v109 = vpack.c.bf16 %v64, %v63
  %v110 = vpack.c.bf16 %v66, %v65
  %v111 = vpack.c.bf16 %v68, %v67
  %v112 = vpack.c.bf16 %v70, %v69
  %v113 = vpack.c.bf16 %v72, %v71
  %v114 = vpack.c.bf16 %v74, %v73
  %v115 = vpack.c.bf16 %v76, %v75
  %v116 = vpack.c.bf16 %v78, %v77
  %v117 = vpack.c.bf16 %v80, %v79
  %v118 = vpack.c.bf16 %v82, %v81
  %v119 = vpack.c.bf16 %v84, %v83
  %v120 = vpack.c.bf16 %v86, %v85
  %v121 = vpack.c.bf16 %v88, %v87
  %v122 = vpack.c.bf16 %v90, %v89
  %v123 = vld [vmem:[%s1] sm:$0xff]
  %v124 = vld [vmem:[%s1 + $0x8] sm:$0xff]
  %v125 = vld [vmem:[%s1 + $0x10] sm:$0xff]
  %v126 = vld [vmem:[%s1 + $0x18] sm:$0xff]
  %v127 = vld [vmem:[%s2] sm:$0x3]
  %v129 = vperm.slane %v127, 0
  %v130 = vperm.slane %v127, 1
  %v137 = vunpack.c.l.b16 %v123
  %v138 = vunpack.c.h.b16 %v123
  %v139 = vunpack.c.l.b16 %v124
  %v140 = vunpack.c.h.b16 %v124
  %v141 = vunpack.c.l.b16 %v125
  %v142 = vunpack.c.h.b16 %v125
  %v143 = vunpack.c.l.b16 %v126
  %v144 = vunpack.c.h.b16 %v126
  %v145 = vpack.c.b16 %v139, %v137
  %v146 = vpack.c.b16 %v140, %v138
  %v147 = vpack.c.b16 %v143, %v141
  %v148 = vpack.c.b16 %v144, %v142
  %vm153 = vcmask 261120
  %v155 = vsel %vm153, %v91, 0
  %v158 = vsel %vm153, %v92, 0
  %v161 = vsel %vm153, %v93, 0
  %v164 = vsel %vm153, %v94, 0
  %v167 = vsel %vm153, %v95, 0
  %v170 = vsel %vm153, %v96, 0
  %v173 = vsel %vm153, %v97, 0
  %v176 = vsel %vm153, %v98, 0
  %v179 = vsel %vm153, %v99, 0
  %v182 = vsel %vm153, %v100, 0
  %v185 = vsel %vm153, %v101, 0
  %v188 = vsel %vm153, %v102, 0
  %v191 = vsel %vm153, %v103, 0
  %v194 = vsel %vm153, %v104, 0
  %v197 = vsel %vm153, %v105, 0
  %v200 = vsel %vm153, %v106, 0
  %v203 = vsel %vm153, %v107, 0
  %v206 = vsel %vm153, %v108, 0
  %v209 = vsel %vm153, %v109, 0
  %v212 = vsel %vm153, %v110, 0
  %v215 = vsel %vm153, %v111, 0
  %v218 = vsel %vm153, %v112, 0
  %v221 = vsel %vm153, %v113, 0
  %v224 = vsel %vm153, %v114, 0
  %v227 = vsel %vm153, %v115, 0
  %v230 = vsel %vm153, %v116, 0
  %v233 = vsel %vm153, %v117, 0
  %v236 = vsel %vm153, %v118, 0
  %v239 = vsel %vm153, %v119, 0
  %v242 = vsel %vm153, %v120, 0
  %v245 = vsel %vm153, %v121, 0
  %v248 = vsel %vm153, %v122, 0
  %250 = vmatpush.bf16.msra.mxu0 0
  %251 = vmatpush.bf16.msra.mxu0 0
  %252 = vmatpush.bf16.msra.mxu0 0
  %253 = vmatpush.bf16.msra.mxu0 0
  %254 = vmatpush.bf16.msra.mxu0 0
  %255 = vmatpush.bf16.msra.mxu0 0
  %256 = vmatpush.bf16.msra.mxu0 %v147
  %257 = vmatpush.bf16.msra.mxu0 %v145
  %258 = vmatmul.bf16.gmra.mxu0 %v155
  %v259 = vpop.f32.mrf.mxu0
  %v260 = vadd.f32 %v129, %v259
  %v261 = vpop.f32.mrf.mxu0
  %v262 = vadd.f32 %v129, %v261
  %263 = vmatmul.bf16.gmra.mxu0 %v158
  %v264 = vpop.f32.mrf.mxu0
  %v265 = vadd.f32 %v129, %v264
  %v266 = vpop.f32.mrf.mxu0
  %v267 = vadd.f32 %v129, %v266
  %268 = vmatmul.bf16.gmra.mxu0 %v161
  %v269 = vpop.f32.mrf.mxu0
  %v270 = vadd.f32 %v129, %v269
  %v271 = vpop.f32.mrf.mxu0
  %v272 = vadd.f32 %v129, %v271
  %273 = vmatmul.bf16.gmra.mxu0 %v164
  %v274 = vpop.f32.mrf.mxu0
  %v275 = vadd.f32 %v129, %v274
  %v276 = vpop.f32.mrf.mxu0
  %v277 = vadd.f32 %v129, %v276
  %278 = vmatmul.bf16.gmra.mxu0 %v167
  %v279 = vpop.f32.mrf.mxu0
  %v280 = vadd.f32 %v129, %v279
  %v281 = vpop.f32.mrf.mxu0
  %v282 = vadd.f32 %v129, %v281
  %283 = vmatmul.bf16.gmra.mxu0 %v170
  %v284 = vpop.f32.mrf.mxu0
  %v285 = vadd.f32 %v129, %v284
  %v286 = vpop.f32.mrf.mxu0
  %v287 = vadd.f32 %v129, %v286
  %288 = vmatmul.bf16.gmra.mxu0 %v173
  %v289 = vpop.f32.mrf.mxu0
  %v290 = vadd.f32 %v129, %v289
  %v291 = vpop.f32.mrf.mxu0
  %v292 = vadd.f32 %v129, %v291
  %293 = vmatmul.bf16.gmra.mxu0 %v176
  %v294 = vpop.f32.mrf.mxu0
  %v295 = vadd.f32 %v129, %v294
  %v296 = vpop.f32.mrf.mxu0
  %v297 = vadd.f32 %v129, %v296
  %298 = vmatmul.bf16.gmra.mxu0 %v179
  %v299 = vpop.f32.mrf.mxu0
  %v300 = vadd.f32 %v129, %v299
  %v301 = vpop.f32.mrf.mxu0
  %v302 = vadd.f32 %v129, %v301
  %303 = vmatmul.bf16.gmra.mxu0 %v182
  %v304 = vpop.f32.mrf.mxu0
  %v305 = vadd.f32 %v129, %v304
  %v306 = vpop.f32.mrf.mxu0
  %v307 = vadd.f32 %v129, %v306
  %308 = vmatmul.bf16.gmra.mxu0 %v185
  %v309 = vpop.f32.mrf.mxu0
  %v310 = vadd.f32 %v129, %v309
  %v311 = vpop.f32.mrf.mxu0
  %v312 = vadd.f32 %v129, %v311
  %313 = vmatmul.bf16.gmra.mxu0 %v188
  %v314 = vpop.f32.mrf.mxu0
  %v315 = vadd.f32 %v129, %v314
  %v316 = vpop.f32.mrf.mxu0
  %v317 = vadd.f32 %v129, %v316
  %318 = vmatmul.bf16.gmra.mxu0 %v191
  %v319 = vpop.f32.mrf.mxu0
  %v320 = vadd.f32 %v129, %v319
  %v321 = vpop.f32.mrf.mxu0
  %v322 = vadd.f32 %v129, %v321
  %323 = vmatmul.bf16.gmra.mxu0 %v194
  %v324 = vpop.f32.mrf.mxu0
  %v325 = vadd.f32 %v129, %v324
  %v326 = vpop.f32.mrf.mxu0
  %v327 = vadd.f32 %v129, %v326
  %328 = vmatmul.bf16.gmra.mxu0 %v197
  %v329 = vpop.f32.mrf.mxu0
  %v330 = vadd.f32 %v129, %v329
  %v331 = vpop.f32.mrf.mxu0
  %v332 = vadd.f32 %v129, %v331
  %333 = vmatmul.bf16.gmra.mxu0 %v200
  %v334 = vpop.f32.mrf.mxu0
  %v335 = vadd.f32 %v129, %v334
  %v336 = vpop.f32.mrf.mxu0
  %v337 = vadd.f32 %v129, %v336
  %338 = vmatmul.bf16.gmra.mxu0 %v203
  %v339 = vpop.f32.mrf.mxu0
  %v340 = vadd.f32 %v129, %v339
  %v341 = vpop.f32.mrf.mxu0
  %v342 = vadd.f32 %v129, %v341
  %343 = vmatmul.bf16.gmra.mxu0 %v206
  %v344 = vpop.f32.mrf.mxu0
  %v345 = vadd.f32 %v129, %v344
  %v346 = vpop.f32.mrf.mxu0
  %v347 = vadd.f32 %v129, %v346
  %348 = vmatmul.bf16.gmra.mxu0 %v209
  %v349 = vpop.f32.mrf.mxu0
  %v350 = vadd.f32 %v129, %v349
  %v351 = vpop.f32.mrf.mxu0
  %v352 = vadd.f32 %v129, %v351
  %353 = vmatmul.bf16.gmra.mxu0 %v212
  %v354 = vpop.f32.mrf.mxu0
  %v355 = vadd.f32 %v129, %v354
  %v356 = vpop.f32.mrf.mxu0
  %v357 = vadd.f32 %v129, %v356
  %358 = vmatmul.bf16.gmra.mxu0 %v215
  %v359 = vpop.f32.mrf.mxu0
  %v360 = vadd.f32 %v129, %v359
  %v361 = vpop.f32.mrf.mxu0
  %v362 = vadd.f32 %v129, %v361
  %363 = vmatmul.bf16.gmra.mxu0 %v218
  %v364 = vpop.f32.mrf.mxu0
  %v365 = vadd.f32 %v129, %v364
  %v366 = vpop.f32.mrf.mxu0
  %v367 = vadd.f32 %v129, %v366
  %368 = vmatmul.bf16.gmra.mxu0 %v221
  %v369 = vpop.f32.mrf.mxu0
  %v370 = vadd.f32 %v129, %v369
  %v371 = vpop.f32.mrf.mxu0
  %v372 = vadd.f32 %v129, %v371
  %373 = vmatmul.bf16.gmra.mxu0 %v224
  %v374 = vpop.f32.mrf.mxu0
  %v375 = vadd.f32 %v129, %v374
  %v376 = vpop.f32.mrf.mxu0
  %v377 = vadd.f32 %v129, %v376
  %378 = vmatmul.bf16.gmra.mxu0 %v227
  %v379 = vpop.f32.mrf.mxu0
  %v380 = vadd.f32 %v129, %v379
  %v381 = vpop.f32.mrf.mxu0
  %v382 = vadd.f32 %v129, %v381
  %383 = vmatmul.bf16.gmra.mxu0 %v230
  %v384 = vpop.f32.mrf.mxu0
  %v385 = vadd.f32 %v129, %v384
  %v386 = vpop.f32.mrf.mxu0
  %v387 = vadd.f32 %v129, %v386
  %388 = vmatmul.bf16.gmra.mxu0 %v233
  %v389 = vpop.f32.mrf.mxu0
  %v390 = vadd.f32 %v129, %v389
  %v391 = vpop.f32.mrf.mxu0
  %v392 = vadd.f32 %v129, %v391
  %393 = vmatmul.bf16.gmra.mxu0 %v236
  %v394 = vpop.f32.mrf.mxu0
  %v395 = vadd.f32 %v129, %v394
  %v396 = vpop.f32.mrf.mxu0
  %v397 = vadd.f32 %v129, %v396
  %398 = vmatmul.bf16.gmra.mxu0 %v239
  %v399 = vpop.f32.mrf.mxu0
  %v400 = vadd.f32 %v129, %v399
  %v401 = vpop.f32.mrf.mxu0
  %v402 = vadd.f32 %v129, %v401
  %403 = vmatmul.bf16.gmra.mxu0 %v242
  %v404 = vpop.f32.mrf.mxu0
  %v405 = vadd.f32 %v129, %v404
  %v406 = vpop.f32.mrf.mxu0
  %v407 = vadd.f32 %v129, %v406
  %408 = vmatmul.bf16.gmra.mxu0 %v245
  %v409 = vpop.f32.mrf.mxu0
  %v410 = vadd.f32 %v129, %v409
  %v411 = vpop.f32.mrf.mxu0
  %v412 = vadd.f32 %v129, %v411
  %413 = vmatmul.bf16.gmra.mxu0 %v248
  %v414 = vpop.f32.mrf.mxu0
  %v415 = vadd.f32 %v129, %v414
  %v416 = vpop.f32.mrf.mxu0
  %v417 = vadd.f32 %v129, %v416
  %418 = vdwg.mxu0
  %419 = vmatpush.bf16.msra.mxu0 0
  %420 = vmatpush.bf16.msra.mxu0 0
  %421 = vmatpush.bf16.msra.mxu0 0
  %422 = vmatpush.bf16.msra.mxu0 0
  %423 = vmatpush.bf16.msra.mxu0 0
  %424 = vmatpush.bf16.msra.mxu0 0
  %425 = vmatpush.bf16.msra.mxu0 %v148
  %426 = vmatpush.bf16.msra.mxu0 %v146
  %427 = vmatmul.bf16.gmra.mxu0 %v155
  %v428 = vpop.f32.mrf.mxu0
  %v429 = vadd.f32 %v130, %v428
  %v430 = vpop.f32.mrf.mxu0
  %v431 = vadd.f32 %v130, %v430
  %432 = vmatmul.bf16.gmra.mxu0 %v158
  %v433 = vpop.f32.mrf.mxu0
  %v434 = vadd.f32 %v130, %v433
  %v435 = vpop.f32.mrf.mxu0
  %v436 = vadd.f32 %v130, %v435
  %437 = vmatmul.bf16.gmra.mxu0 %v161
  %v438 = vpop.f32.mrf.mxu0
  %v439 = vadd.f32 %v130, %v438
  %v440 = vpop.f32.mrf.mxu0
  %v441 = vadd.f32 %v130, %v440
  %442 = vmatmul.bf16.gmra.mxu0 %v164
  %v443 = vpop.f32.mrf.mxu0
  %v444 = vadd.f32 %v130, %v443
  %v445 = vpop.f32.mrf.mxu0
  %v446 = vadd.f32 %v130, %v445
  %447 = vmatmul.bf16.gmra.mxu0 %v167
  %v448 = vpop.f32.mrf.mxu0
  %v449 = vadd.f32 %v130, %v448
  %v450 = vpop.f32.mrf.mxu0
  %v451 = vadd.f32 %v130, %v450
  %452 = vmatmul.bf16.gmra.mxu0 %v170
  %v453 = vpop.f32.mrf.mxu0
  %v454 = vadd.f32 %v130, %v453
  %v455 = vpop.f32.mrf.mxu0
  %v456 = vadd.f32 %v130, %v455
  %457 = vmatmul.bf16.gmra.mxu0 %v173
  %v458 = vpop.f32.mrf.mxu0
  %v459 = vadd.f32 %v130, %v458
  %v460 = vpop.f32.mrf.mxu0
  %v461 = vadd.f32 %v130, %v460
  %462 = vmatmul.bf16.gmra.mxu0 %v176
  %v463 = vpop.f32.mrf.mxu0
  %v464 = vadd.f32 %v130, %v463
  %v465 = vpop.f32.mrf.mxu0
  %v466 = vadd.f32 %v130, %v465
  %467 = vmatmul.bf16.gmra.mxu0 %v179
  %v468 = vpop.f32.mrf.mxu0
  %v469 = vadd.f32 %v130, %v468
  %v470 = vpop.f32.mrf.mxu0
  %v471 = vadd.f32 %v130, %v470
  %472 = vmatmul.bf16.gmra.mxu0 %v182
  %v473 = vpop.f32.mrf.mxu0
  %v474 = vadd.f32 %v130, %v473
  %v475 = vpop.f32.mrf.mxu0
  %v476 = vadd.f32 %v130, %v475
  %477 = vmatmul.bf16.gmra.mxu0 %v185
  %v478 = vpop.f32.mrf.mxu0
  %v479 = vadd.f32 %v130, %v478
  %v480 = vpop.f32.mrf.mxu0
  %v481 = vadd.f32 %v130, %v480
  %482 = vmatmul.bf16.gmra.mxu0 %v188
  %v483 = vpop.f32.mrf.mxu0
  %v484 = vadd.f32 %v130, %v483
  %v485 = vpop.f32.mrf.mxu0
  %v486 = vadd.f32 %v130, %v485
  %487 = vmatmul.bf16.gmra.mxu0 %v191
  %v488 = vpop.f32.mrf.mxu0
  %v489 = vadd.f32 %v130, %v488
  %v490 = vpop.f32.mrf.mxu0
  %v491 = vadd.f32 %v130, %v490
  %492 = vmatmul.bf16.gmra.mxu0 %v194
  %v493 = vpop.f32.mrf.mxu0
  %v494 = vadd.f32 %v130, %v493
  %v495 = vpop.f32.mrf.mxu0
  %v496 = vadd.f32 %v130, %v495
  %497 = vmatmul.bf16.gmra.mxu0 %v197
  %v498 = vpop.f32.mrf.mxu0
  %v499 = vadd.f32 %v130, %v498
  %v500 = vpop.f32.mrf.mxu0
  %v501 = vadd.f32 %v130, %v500
  %502 = vmatmul.bf16.gmra.mxu0 %v200
  %v503 = vpop.f32.mrf.mxu0
  %v504 = vadd.f32 %v130, %v503
  %v505 = vpop.f32.mrf.mxu0
  %v506 = vadd.f32 %v130, %v505
  %507 = vmatmul.bf16.gmra.mxu0 %v203
  %v508 = vpop.f32.mrf.mxu0
  %v509 = vadd.f32 %v130, %v508
  %v510 = vpop.f32.mrf.mxu0
  %v511 = vadd.f32 %v130, %v510
  %512 = vmatmul.bf16.gmra.mxu0 %v206
  %v513 = vpop.f32.mrf.mxu0
  %v514 = vadd.f32 %v130, %v513
  %v515 = vpop.f32.mrf.mxu0
  %v516 = vadd.f32 %v130, %v515
  %517 = vmatmul.bf16.gmra.mxu0 %v209
  %v518 = vpop.f32.mrf.mxu0
  %v519 = vadd.f32 %v130, %v518
  %v520 = vpop.f32.mrf.mxu0
  %v521 = vadd.f32 %v130, %v520
  %522 = vmatmul.bf16.gmra.mxu0 %v212
  %v523 = vpop.f32.mrf.mxu0
  %v524 = vadd.f32 %v130, %v523
  %v525 = vpop.f32.mrf.mxu0
  %v526 = vadd.f32 %v130, %v525
  %527 = vmatmul.bf16.gmra.mxu0 %v215
  %v528 = vpop.f32.mrf.mxu0
  %v529 = vadd.f32 %v130, %v528
  %v530 = vpop.f32.mrf.mxu0
  %v531 = vadd.f32 %v130, %v530
  %532 = vmatmul.bf16.gmra.mxu0 %v218
  %v533 = vpop.f32.mrf.mxu0
  %v534 = vadd.f32 %v130, %v533
  %v535 = vpop.f32.mrf.mxu0
  %v536 = vadd.f32 %v130, %v535
  %537 = vmatmul.bf16.gmra.mxu0 %v221
  %v538 = vpop.f32.mrf.mxu0
  %v539 = vadd.f32 %v130, %v538
  %v540 = vpop.f32.mrf.mxu0
  %v541 = vadd.f32 %v130, %v540
  %542 = vmatmul.bf16.gmra.mxu0 %v224
  %v543 = vpop.f32.mrf.mxu0
  %v544 = vadd.f32 %v130, %v543
  %v545 = vpop.f32.mrf.mxu0
  %v546 = vadd.f32 %v130, %v545
  %547 = vmatmul.bf16.gmra.mxu0 %v227
  %v548 = vpop.f32.mrf.mxu0
  %v549 = vadd.f32 %v130, %v548
  %v550 = vpop.f32.mrf.mxu0
  %v551 = vadd.f32 %v130, %v550
  %552 = vmatmul.bf16.gmra.mxu0 %v230
  %v553 = vpop.f32.mrf.mxu0
  %v554 = vadd.f32 %v130, %v553
  %v555 = vpop.f32.mrf.mxu0
  %v556 = vadd.f32 %v130, %v555
  %557 = vmatmul.bf16.gmra.mxu0 %v233
  %v558 = vpop.f32.mrf.mxu0
  %v559 = vadd.f32 %v130, %v558
  %v560 = vpop.f32.mrf.mxu0
  %v561 = vadd.f32 %v130, %v560
  %562 = vmatmul.bf16.gmra.mxu0 %v236
  %v563 = vpop.f32.mrf.mxu0
  %v564 = vadd.f32 %v130, %v563
  %v565 = vpop.f32.mrf.mxu0
  %v566 = vadd.f32 %v130, %v565
  %567 = vmatmul.bf16.gmra.mxu0 %v239
  %v568 = vpop.f32.mrf.mxu0
  %v569 = vadd.f32 %v130, %v568
  %v570 = vpop.f32.mrf.mxu0
  %v571 = vadd.f32 %v130, %v570
  %572 = vmatmul.bf16.gmra.mxu0 %v242
  %v573 = vpop.f32.mrf.mxu0
  %v574 = vadd.f32 %v130, %v573
  %v575 = vpop.f32.mrf.mxu0
  %v576 = vadd.f32 %v130, %v575
  %577 = vmatmul.bf16.gmra.mxu0 %v245
  %v578 = vpop.f32.mrf.mxu0
  %v579 = vadd.f32 %v130, %v578
  %v580 = vpop.f32.mrf.mxu0
  %v581 = vadd.f32 %v130, %v580
  %582 = vmatmul.bf16.gmra.mxu0 %v248
  %v583 = vpop.f32.mrf.mxu0
  %v584 = vadd.f32 %v130, %v583
  %v585 = vpop.f32.mrf.mxu0
  %v586 = vadd.f32 %v130, %v585
  %587 = vdwg.mxu0
  %v588 = vtanh.pop %v260
  %v589 = vtanh.pop %v429
  %v590 = vtanh.pop %v262
  %v591 = vtanh.pop %v431
  %v592 = vtanh.pop %v265
  %v593 = vtanh.pop %v434
  %v594 = vtanh.pop %v267
  %v595 = vtanh.pop %v436
  %v596 = vtanh.pop %v270
  %v597 = vtanh.pop %v439
  %v598 = vtanh.pop %v272
  %v599 = vtanh.pop %v441
  %v600 = vtanh.pop %v275
  %v601 = vtanh.pop %v444
  %v602 = vtanh.pop %v277
  %v603 = vtanh.pop %v446
  %v604 = vtanh.pop %v280
  %v605 = vtanh.pop %v449
  %v606 = vtanh.pop %v282
  %v607 = vtanh.pop %v451
  %v608 = vtanh.pop %v285
  %v609 = vtanh.pop %v454
  %v610 = vtanh.pop %v287
  %v611 = vtanh.pop %v456
  %v612 = vtanh.pop %v290
  %v613 = vtanh.pop %v459
  %v614 = vtanh.pop %v292
  %v615 = vtanh.pop %v461
  %v616 = vtanh.pop %v295
  %v617 = vtanh.pop %v464
  %v618 = vtanh.pop %v297
  %v619 = vtanh.pop %v466
  %v620 = vtanh.pop %v300
  %v621 = vtanh.pop %v469
  %v622 = vtanh.pop %v302
  %v623 = vtanh.pop %v471
  %v624 = vtanh.pop %v305
  %v625 = vtanh.pop %v474
  %v626 = vtanh.pop %v307
  %v627 = vtanh.pop %v476
  %v628 = vtanh.pop %v310
  %v629 = vtanh.pop %v479
  %v630 = vtanh.pop %v312
  %v631 = vtanh.pop %v481
  %v632 = vtanh.pop %v315
  %v633 = vtanh.pop %v484
  %v634 = vtanh.pop %v317
  %v635 = vtanh.pop %v486
  %v636 = vtanh.pop %v320
  %v637 = vtanh.pop %v489
  %v638 = vtanh.pop %v322
  %v639 = vtanh.pop %v491
  %v640 = vtanh.pop %v325
  %v641 = vtanh.pop %v494
  %v642 = vtanh.pop %v327
  %v643 = vtanh.pop %v496
  %v644 = vtanh.pop %v330
  %v645 = vtanh.pop %v499
  %v646 = vtanh.pop %v332
  %v647 = vtanh.pop %v501
  %v648 = vtanh.pop %v335
  %v649 = vtanh.pop %v504
  %v650 = vtanh.pop %v337
  %v651 = vtanh.pop %v506
  %v652 = vtanh.pop %v340
  %v653 = vtanh.pop %v509
  %v654 = vtanh.pop %v342
  %v655 = vtanh.pop %v511
  %v656 = vtanh.pop %v345
  %v657 = vtanh.pop %v514
  %v658 = vtanh.pop %v347
  %v659 = vtanh.pop %v516
  %v660 = vtanh.pop %v350
  %v661 = vtanh.pop %v519
  %v662 = vtanh.pop %v352
  %v663 = vtanh.pop %v521
  %v664 = vtanh.pop %v355
  %v665 = vtanh.pop %v524
  %v666 = vtanh.pop %v357
  %v667 = vtanh.pop %v526
  %v668 = vtanh.pop %v360
  %v669 = vtanh.pop %v529
  %v670 = vtanh.pop %v362
  %v671 = vtanh.pop %v531
  %v672 = vtanh.pop %v365
  %v673 = vtanh.pop %v534
  %v674 = vtanh.pop %v367
  %v675 = vtanh.pop %v536
  %v676 = vtanh.pop %v370
  %v677 = vtanh.pop %v539
  %v678 = vtanh.pop %v372
  %v679 = vtanh.pop %v541
  %v680 = vtanh.pop %v375
  %v681 = vtanh.pop %v544
  %v682 = vtanh.pop %v377
  %v683 = vtanh.pop %v546
  %v684 = vtanh.pop %v380
  %v685 = vtanh.pop %v549
  %v686 = vtanh.pop %v382
  %v687 = vtanh.pop %v551
  %v688 = vtanh.pop %v385
  %v689 = vtanh.pop %v554
  %v690 = vtanh.pop %v387
  %v691 = vtanh.pop %v556
  %v692 = vtanh.pop %v390
  %v693 = vtanh.pop %v559
  %v694 = vtanh.pop %v392
  %v695 = vtanh.pop %v561
  %v696 = vtanh.pop %v395
  %v697 = vtanh.pop %v564
  %v698 = vtanh.pop %v397
  %v699 = vtanh.pop %v566
  %v700 = vtanh.pop %v400
  %v701 = vtanh.pop %v569
  %v702 = vtanh.pop %v402
  %v703 = vtanh.pop %v571
  %v704 = vtanh.pop %v405
  %v705 = vtanh.pop %v574
  %v706 = vtanh.pop %v407
  %v707 = vtanh.pop %v576
  %v708 = vtanh.pop %v410
  %v709 = vtanh.pop %v579
  %v710 = vtanh.pop %v412
  %v711 = vtanh.pop %v581
  %v712 = vtanh.pop %v415
  %v713 = vtanh.pop %v584
  %v714 = vtanh.pop %v417
  %v715 = vtanh.pop %v586
  %v716 = vpack.c.bf16 %v590, %v588
  %v717 = vpack.c.bf16 %v591, %v589
  %v718 = vpack.c.bf16 %v594, %v592
  %v719 = vpack.c.bf16 %v595, %v593
  %v720 = vpack.c.bf16 %v598, %v596
  %v721 = vpack.c.bf16 %v599, %v597
  %v722 = vpack.c.bf16 %v602, %v600
  %v723 = vpack.c.bf16 %v603, %v601
  %v724 = vpack.c.bf16 %v606, %v604
  %v725 = vpack.c.bf16 %v607, %v605
  %v726 = vpack.c.bf16 %v610, %v608
  %v727 = vpack.c.bf16 %v611, %v609
  %v728 = vpack.c.bf16 %v614, %v612
  %v729 = vpack.c.bf16 %v615, %v613
  %v730 = vpack.c.bf16 %v618, %v616
  %v731 = vpack.c.bf16 %v619, %v617
  %v732 = vpack.c.bf16 %v622, %v620
  %v733 = vpack.c.bf16 %v623, %v621
  %v734 = vpack.c.bf16 %v626, %v624
  %v735 = vpack.c.bf16 %v627, %v625
  %v736 = vpack.c.bf16 %v630, %v628
  %v737 = vpack.c.bf16 %v631, %v629
  %v738 = vpack.c.bf16 %v634, %v632
  %v739 = vpack.c.bf16 %v635, %v633
  %v740 = vpack.c.bf16 %v638, %v636
  %v741 = vpack.c.bf16 %v639, %v637
  %v742 = vpack.c.bf16 %v642, %v640
  %v743 = vpack.c.bf16 %v643, %v641
  %v744 = vpack.c.bf16 %v646, %v644
  %v745 = vpack.c.bf16 %v647, %v645
  %v746 = vpack.c.bf16 %v650, %v648
  %v747 = vpack.c.bf16 %v651, %v649
  %v748 = vpack.c.bf16 %v654, %v652
  %v749 = vpack.c.bf16 %v655, %v653
  %v750 = vpack.c.bf16 %v658, %v656
  %v751 = vpack.c.bf16 %v659, %v657
  %v752 = vpack.c.bf16 %v662, %v660
  %v753 = vpack.c.bf16 %v663, %v661
  %v754 = vpack.c.bf16 %v666, %v664
  %v755 = vpack.c.bf16 %v667, %v665
  %v756 = vpack.c.bf16 %v670, %v668
  %v757 = vpack.c.bf16 %v671, %v669
  %v758 = vpack.c.bf16 %v674, %v672
  %v759 = vpack.c.bf16 %v675, %v673
  %v760 = vpack.c.bf16 %v678, %v676
  %v761 = vpack.c.bf16 %v679, %v677
  %v762 = vpack.c.bf16 %v682, %v680
  %v763 = vpack.c.bf16 %v683, %v681
  %v764 = vpack.c.bf16 %v686, %v684
  %v765 = vpack.c.bf16 %v687, %v685
  %v766 = vpack.c.bf16 %v690, %v688
  %v767 = vpack.c.bf16 %v691, %v689
  %v768 = vpack.c.bf16 %v694, %v692
  %v769 = vpack.c.bf16 %v695, %v693
  %v770 = vpack.c.bf16 %v698, %v696
  %v771 = vpack.c.bf16 %v699, %v697
  %v772 = vpack.c.bf16 %v702, %v700
  %v773 = vpack.c.bf16 %v703, %v701
  %v774 = vpack.c.bf16 %v706, %v704
  %v775 = vpack.c.bf16 %v707, %v705
  %v776 = vpack.c.bf16 %v710, %v708
  %v777 = vpack.c.bf16 %v711, %v709
  %v778 = vpack.c.bf16 %v714, %v712
  %v779 = vpack.c.bf16 %v715, %v713
  %v780 = vld [vmem:[%s3] sm:$0xf]
  %v781 = vld [vmem:[%s3 + $0x4] sm:$0xf]
  %v782 = vld [vmem:[%s3 + $0x8] sm:$0xf]
  %v783 = vld [vmem:[%s3 + $0xc] sm:$0xf]
  %v784 = vld [vmem:[%s3 + $0x10] sm:$0xf]
  %v785 = vld [vmem:[%s3 + $0x14] sm:$0xf]
  %v786 = vld [vmem:[%s3 + $0x18] sm:$0xf]
  %v787 = vld [vmem:[%s3 + $0x1c] sm:$0xf]
  %v788 = vld [vmem:[%s3 + $0x20] sm:$0xf]
  %v789 = vld [vmem:[%s3 + $0x24] sm:$0xf]
  %v790 = vld [vmem:[%s3 + $0x28] sm:$0xf]
  %v791 = vld [vmem:[%s3 + $0x2c] sm:$0xf]
  %v792 = vld [vmem:[%s3 + $0x30] sm:$0xf]
  %v793 = vld [vmem:[%s3 + $0x34] sm:$0xf]
  %v794 = vld [vmem:[%s3 + $0x38] sm:$0xf]
  %v795 = vld [vmem:[%s3 + $0x3c] sm:$0xf]
  %v796 = vld [vmem:[%s3 + $0x40] sm:$0xf]
  %v797 = vld [vmem:[%s3 + $0x44] sm:$0xf]
  %v798 = vld [vmem:[%s3 + $0x48] sm:$0xf]
  %v799 = vld [vmem:[%s3 + $0x4c] sm:$0xf]
  %v800 = vld [vmem:[%s3 + $0x50] sm:$0xf]
  %v801 = vld [vmem:[%s3 + $0x54] sm:$0xf]
  %v802 = vld [vmem:[%s3 + $0x58] sm:$0xf]
  %v803 = vld [vmem:[%s3 + $0x5c] sm:$0xf]
  %v804 = vld [vmem:[%s3 + $0x60] sm:$0xf]
  %v805 = vld [vmem:[%s3 + $0x64] sm:$0xf]
  %v806 = vld [vmem:[%s3 + $0x68] sm:$0xf]
  %v807 = vld [vmem:[%s3 + $0x6c] sm:$0xf]
  %v808 = vld [vmem:[%s3 + $0x70] sm:$0xf]
  %v809 = vld [vmem:[%s3 + $0x74] sm:$0xf]
  %v810 = vld [vmem:[%s3 + $0x78] sm:$0xf]
  %v811 = vld [vmem:[%s3 + $0x7c] sm:$0xf]
  %v812 = vld [vmem:[%s4] sm:$0x1]
  %v814 = vperm.slane %v812, 0
  %v848 = vunpack.c.l.b16 %v780
  %v849 = vunpack.c.l.b16 %v781
  %v850 = vunpack.c.l.b16 %v782
  %v851 = vunpack.c.l.b16 %v783
  %v852 = vunpack.c.l.b16 %v784
  %v853 = vunpack.c.l.b16 %v785
  %v854 = vunpack.c.l.b16 %v786
  %v855 = vunpack.c.l.b16 %v787
  %v856 = vunpack.c.l.b16 %v788
  %v857 = vunpack.c.l.b16 %v789
  %v858 = vunpack.c.l.b16 %v790
  %v859 = vunpack.c.l.b16 %v791
  %v860 = vunpack.c.l.b16 %v792
  %v861 = vunpack.c.l.b16 %v793
  %v862 = vunpack.c.l.b16 %v794
  %v863 = vunpack.c.l.b16 %v795
  %v864 = vunpack.c.l.b16 %v796
  %v865 = vunpack.c.l.b16 %v797
  %v866 = vunpack.c.l.b16 %v798
  %v867 = vunpack.c.l.b16 %v799
  %v868 = vunpack.c.l.b16 %v800
  %v869 = vunpack.c.l.b16 %v801
  %v870 = vunpack.c.l.b16 %v802
  %v871 = vunpack.c.l.b16 %v803
  %v872 = vunpack.c.l.b16 %v804
  %v873 = vunpack.c.l.b16 %v805
  %v874 = vunpack.c.l.b16 %v806
  %v875 = vunpack.c.l.b16 %v807
  %v876 = vunpack.c.l.b16 %v808
  %v877 = vunpack.c.l.b16 %v809
  %v878 = vunpack.c.l.b16 %v810
  %v879 = vunpack.c.l.b16 %v811
  %v880 = vpack.c.b16 %v849, %v848
  %v881 = vpack.c.b16 %v851, %v850
  %v882 = vpack.c.b16 %v853, %v852
  %v883 = vpack.c.b16 %v855, %v854
  %v884 = vpack.c.b16 %v857, %v856
  %v885 = vpack.c.b16 %v859, %v858
  %v886 = vpack.c.b16 %v861, %v860
  %v887 = vpack.c.b16 %v863, %v862
  %v888 = vpack.c.b16 %v865, %v864
  %v889 = vpack.c.b16 %v867, %v866
  %v890 = vpack.c.b16 %v869, %v868
  %v891 = vpack.c.b16 %v871, %v870
  %v892 = vpack.c.b16 %v873, %v872
  %v893 = vpack.c.b16 %v875, %v874
  %v894 = vpack.c.b16 %v877, %v876
  %v895 = vpack.c.b16 %v879, %v878
  %912 = vmatpush.bf16.msra.mxu0 %v887
  %913 = vmatpush.bf16.msra.mxu0 %v886
  %914 = vmatpush.bf16.msra.mxu0 %v885
  %915 = vmatpush.bf16.msra.mxu0 %v884
  %916 = vmatpush.bf16.msra.mxu0 %v883
  %917 = vmatpush.bf16.msra.mxu0 %v882
  %918 = vmatpush.bf16.msra.mxu0 %v881
  %919 = vmatpush.bf16.msra.mxu0 %v880
  %920 = vmatmul.bf16.gmra.mxu0 %v716
  %v921 = vpop.f32.mrf.mxu0
  %v922 = vadd.f32 %v814, %v921
  %v923 = vpop.f32.mrf.mxu0
  %v924 = vadd.f32 %v814, %v923
  %925 = vmatmul.bf16.gmra.mxu0 %v718
  %v926 = vpop.f32.mrf.mxu0
  %v927 = vadd.f32 %v814, %v926
  %v928 = vpop.f32.mrf.mxu0
  %v929 = vadd.f32 %v814, %v928
  %930 = vmatmul.bf16.gmra.mxu0 %v720
  %v931 = vpop.f32.mrf.mxu0
  %v932 = vadd.f32 %v814, %v931
  %v933 = vpop.f32.mrf.mxu0
  %v934 = vadd.f32 %v814, %v933
  %935 = vmatmul.bf16.gmra.mxu0 %v722
  %v936 = vpop.f32.mrf.mxu0
  %v937 = vadd.f32 %v814, %v936
  %v938 = vpop.f32.mrf.mxu0
  %v939 = vadd.f32 %v814, %v938
  %940 = vmatmul.bf16.gmra.mxu0 %v724
  %v941 = vpop.f32.mrf.mxu0
  %v942 = vadd.f32 %v814, %v941
  %v943 = vpop.f32.mrf.mxu0
  %v944 = vadd.f32 %v814, %v943
  %945 = vmatmul.bf16.gmra.mxu0 %v726
  %v946 = vpop.f32.mrf.mxu0
  %v947 = vadd.f32 %v814, %v946
  %v948 = vpop.f32.mrf.mxu0
  %v949 = vadd.f32 %v814, %v948
  %950 = vmatmul.bf16.gmra.mxu0 %v728
  %v951 = vpop.f32.mrf.mxu0
  %v952 = vadd.f32 %v814, %v951
  %v953 = vpop.f32.mrf.mxu0
  %v954 = vadd.f32 %v814, %v953
  %955 = vmatmul.bf16.gmra.mxu0 %v730
  %v956 = vpop.f32.mrf.mxu0
  %v957 = vadd.f32 %v814, %v956
  %v958 = vpop.f32.mrf.mxu0
  %v959 = vadd.f32 %v814, %v958
  %960 = vmatmul.bf16.gmra.mxu0 %v732
  %v961 = vpop.f32.mrf.mxu0
  %v962 = vadd.f32 %v814, %v961
  %v963 = vpop.f32.mrf.mxu0
  %v964 = vadd.f32 %v814, %v963
  %965 = vmatmul.bf16.gmra.mxu0 %v734
  %v966 = vpop.f32.mrf.mxu0
  %v967 = vadd.f32 %v814, %v966
  %v968 = vpop.f32.mrf.mxu0
  %v969 = vadd.f32 %v814, %v968
  %970 = vmatmul.bf16.gmra.mxu0 %v736
  %v971 = vpop.f32.mrf.mxu0
  %v972 = vadd.f32 %v814, %v971
  %v973 = vpop.f32.mrf.mxu0
  %v974 = vadd.f32 %v814, %v973
  %975 = vmatmul.bf16.gmra.mxu0 %v738
  %v976 = vpop.f32.mrf.mxu0
  %v977 = vadd.f32 %v814, %v976
  %v978 = vpop.f32.mrf.mxu0
  %v979 = vadd.f32 %v814, %v978
  %980 = vmatmul.bf16.gmra.mxu0 %v740
  %v981 = vpop.f32.mrf.mxu0
  %v982 = vadd.f32 %v814, %v981
  %v983 = vpop.f32.mrf.mxu0
  %v984 = vadd.f32 %v814, %v983
  %985 = vmatmul.bf16.gmra.mxu0 %v742
  %v986 = vpop.f32.mrf.mxu0
  %v987 = vadd.f32 %v814, %v986
  %v988 = vpop.f32.mrf.mxu0
  %v989 = vadd.f32 %v814, %v988
  %990 = vmatmul.bf16.gmra.mxu0 %v744
  %v991 = vpop.f32.mrf.mxu0
  %v992 = vadd.f32 %v814, %v991
  %v993 = vpop.f32.mrf.mxu0
  %v994 = vadd.f32 %v814, %v993
  %995 = vmatmul.bf16.gmra.mxu0 %v746
  %v996 = vpop.f32.mrf.mxu0
  %v997 = vadd.f32 %v814, %v996
  %v998 = vpop.f32.mrf.mxu0
  %v999 = vadd.f32 %v814, %v998
  %1000 = vmatmul.bf16.gmra.mxu0 %v748
  %v1001 = vpop.f32.mrf.mxu0
  %v1002 = vadd.f32 %v814, %v1001
  %v1003 = vpop.f32.mrf.mxu0
  %v1004 = vadd.f32 %v814, %v1003
  %1005 = vmatmul.bf16.gmra.mxu0 %v750
  %v1006 = vpop.f32.mrf.mxu0
  %v1007 = vadd.f32 %v814, %v1006
  %v1008 = vpop.f32.mrf.mxu0
  %v1009 = vadd.f32 %v814, %v1008
  %1010 = vmatmul.bf16.gmra.mxu0 %v752
  %v1011 = vpop.f32.mrf.mxu0
  %v1012 = vadd.f32 %v814, %v1011
  %v1013 = vpop.f32.mrf.mxu0
  %v1014 = vadd.f32 %v814, %v1013
  %1015 = vmatmul.bf16.gmra.mxu0 %v754
  %v1016 = vpop.f32.mrf.mxu0
  %v1017 = vadd.f32 %v814, %v1016
  %v1018 = vpop.f32.mrf.mxu0
  %v1019 = vadd.f32 %v814, %v1018
  %1020 = vmatmul.bf16.gmra.mxu0 %v756
  %v1021 = vpop.f32.mrf.mxu0
  %v1022 = vadd.f32 %v814, %v1021
  %v1023 = vpop.f32.mrf.mxu0
  %v1024 = vadd.f32 %v814, %v1023
  %1025 = vmatmul.bf16.gmra.mxu0 %v758
  %v1026 = vpop.f32.mrf.mxu0
  %v1027 = vadd.f32 %v814, %v1026
  %v1028 = vpop.f32.mrf.mxu0
  %v1029 = vadd.f32 %v814, %v1028
  %1030 = vmatmul.bf16.gmra.mxu0 %v760
  %v1031 = vpop.f32.mrf.mxu0
  %v1032 = vadd.f32 %v814, %v1031
  %v1033 = vpop.f32.mrf.mxu0
  %v1034 = vadd.f32 %v814, %v1033
  %1035 = vmatmul.bf16.gmra.mxu0 %v762
  %v1036 = vpop.f32.mrf.mxu0
  %v1037 = vadd.f32 %v814, %v1036
  %v1038 = vpop.f32.mrf.mxu0
  %v1039 = vadd.f32 %v814, %v1038
  %1040 = vmatmul.bf16.gmra.mxu0 %v764
  %v1041 = vpop.f32.mrf.mxu0
  %v1042 = vadd.f32 %v814, %v1041
  %v1043 = vpop.f32.mrf.mxu0
  %v1044 = vadd.f32 %v814, %v1043
  %1045 = vmatmul.bf16.gmra.mxu0 %v766
  %v1046 = vpop.f32.mrf.mxu0
  %v1047 = vadd.f32 %v814, %v1046
  %v1048 = vpop.f32.mrf.mxu0
  %v1049 = vadd.f32 %v814, %v1048
  %1050 = vmatmul.bf16.gmra.mxu0 %v768
  %v1051 = vpop.f32.mrf.mxu0
  %v1052 = vadd.f32 %v814, %v1051
  %v1053 = vpop.f32.mrf.mxu0
  %v1054 = vadd.f32 %v814, %v1053
  %1055 = vmatmul.bf16.gmra.mxu0 %v770
  %v1056 = vpop.f32.mrf.mxu0
  %v1057 = vadd.f32 %v814, %v1056
  %v1058 = vpop.f32.mrf.mxu0
  %v1059 = vadd.f32 %v814, %v1058
  %1060 = vmatmul.bf16.gmra.mxu0 %v772
  %v1061 = vpop.f32.mrf.mxu0
  %v1062 = vadd.f32 %v814, %v1061
  %v1063 = vpop.f32.mrf.mxu0
  %v1064 = vadd.f32 %v814, %v1063
  %1065 = vmatmul.bf16.gmra.mxu0 %v774
  %v1066 = vpop.f32.mrf.mxu0
  %v1067 = vadd.f32 %v814, %v1066
  %v1068 = vpop.f32.mrf.mxu0
  %v1069 = vadd.f32 %v814, %v1068
  %1070 = vmatmul.bf16.gmra.mxu0 %v776
  %v1071 = vpop.f32.mrf.mxu0
  %v1072 = vadd.f32 %v814, %v1071
  %v1073 = vpop.f32.mrf.mxu0
  %v1074 = vadd.f32 %v814, %v1073
  %1075 = vmatmul.bf16.gmra.mxu0 %v778
  %v1076 = vpop.f32.mrf.mxu0
  %v1077 = vadd.f32 %v814, %v1076
  %v1078 = vpop.f32.mrf.mxu0
  %v1079 = vadd.f32 %v814, %v1078
  %1080 = vdwg.mxu0
  %1081 = vmatpush.bf16.msra.mxu0 %v895
  %1082 = vmatpush.bf16.msra.mxu0 %v894
  %1083 = vmatpush.bf16.msra.mxu0 %v893
  %1084 = vmatpush.bf16.msra.mxu0 %v892
  %1085 = vmatpush.bf16.msra.mxu0 %v891
  %1086 = vmatpush.bf16.msra.mxu0 %v890
  %1087 = vmatpush.bf16.msra.mxu0 %v889
  %1088 = vmatpush.bf16.msra.mxu0 %v888
  %1089 = vmatmul.bf16.gmra.mxu0 %v717
  %v1090 = vpop.f32.mrf.mxu0
  %v1091 = vadd.f32 %v922, %v1090
  %v1092 = vpop.f32.mrf.mxu0
  %v1093 = vadd.f32 %v924, %v1092
  %1094 = vmatmul.bf16.gmra.mxu0 %v719
  %v1095 = vpop.f32.mrf.mxu0
  %v1096 = vadd.f32 %v927, %v1095
  %v1097 = vpop.f32.mrf.mxu0
  %v1098 = vadd.f32 %v929, %v1097
  %1099 = vmatmul.bf16.gmra.mxu0 %v721
  %v1100 = vpop.f32.mrf.mxu0
  %v1101 = vadd.f32 %v932, %v1100
  %v1102 = vpop.f32.mrf.mxu0
  %v1103 = vadd.f32 %v934, %v1102
  %1104 = vmatmul.bf16.gmra.mxu0 %v723
  %v1105 = vpop.f32.mrf.mxu0
  %v1106 = vadd.f32 %v937, %v1105
  %v1107 = vpop.f32.mrf.mxu0
  %v1108 = vadd.f32 %v939, %v1107
  %1109 = vmatmul.bf16.gmra.mxu0 %v725
  %v1110 = vpop.f32.mrf.mxu0
  %v1111 = vadd.f32 %v942, %v1110
  %v1112 = vpop.f32.mrf.mxu0
  %v1113 = vadd.f32 %v944, %v1112
  %1114 = vmatmul.bf16.gmra.mxu0 %v727
  %v1115 = vpop.f32.mrf.mxu0
  %v1116 = vadd.f32 %v947, %v1115
  %v1117 = vpop.f32.mrf.mxu0
  %v1118 = vadd.f32 %v949, %v1117
  %1119 = vmatmul.bf16.gmra.mxu0 %v729
  %v1120 = vpop.f32.mrf.mxu0
  %v1121 = vadd.f32 %v952, %v1120
  %v1122 = vpop.f32.mrf.mxu0
  %v1123 = vadd.f32 %v954, %v1122
  %1124 = vmatmul.bf16.gmra.mxu0 %v731
  %v1125 = vpop.f32.mrf.mxu0
  %v1126 = vadd.f32 %v957, %v1125
  %v1127 = vpop.f32.mrf.mxu0
  %v1128 = vadd.f32 %v959, %v1127
  %1129 = vmatmul.bf16.gmra.mxu0 %v733
  %v1130 = vpop.f32.mrf.mxu0
  %v1131 = vadd.f32 %v962, %v1130
  %v1132 = vpop.f32.mrf.mxu0
  %v1133 = vadd.f32 %v964, %v1132
  %1134 = vmatmul.bf16.gmra.mxu0 %v735
  %v1135 = vpop.f32.mrf.mxu0
  %v1136 = vadd.f32 %v967, %v1135
  %v1137 = vpop.f32.mrf.mxu0
  %v1138 = vadd.f32 %v969, %v1137
  %1139 = vmatmul.bf16.gmra.mxu0 %v737
  %v1140 = vpop.f32.mrf.mxu0
  %v1141 = vadd.f32 %v972, %v1140
  %v1142 = vpop.f32.mrf.mxu0
  %v1143 = vadd.f32 %v974, %v1142
  %1144 = vmatmul.bf16.gmra.mxu0 %v739
  %v1145 = vpop.f32.mrf.mxu0
  %v1146 = vadd.f32 %v977, %v1145
  %v1147 = vpop.f32.mrf.mxu0
  %v1148 = vadd.f32 %v979, %v1147
  %1149 = vmatmul.bf16.gmra.mxu0 %v741
  %v1150 = vpop.f32.mrf.mxu0
  %v1151 = vadd.f32 %v982, %v1150
  %v1152 = vpop.f32.mrf.mxu0
  %v1153 = vadd.f32 %v984, %v1152
  %1154 = vmatmul.bf16.gmra.mxu0 %v743
  %v1155 = vpop.f32.mrf.mxu0
  %v1156 = vadd.f32 %v987, %v1155
  %v1157 = vpop.f32.mrf.mxu0
  %v1158 = vadd.f32 %v989, %v1157
  %1159 = vmatmul.bf16.gmra.mxu0 %v745
  %v1160 = vpop.f32.mrf.mxu0
  %v1161 = vadd.f32 %v992, %v1160
  %v1162 = vpop.f32.mrf.mxu0
  %v1163 = vadd.f32 %v994, %v1162
  %1164 = vmatmul.bf16.gmra.mxu0 %v747
  %v1165 = vpop.f32.mrf.mxu0
  %v1166 = vadd.f32 %v997, %v1165
  %v1167 = vpop.f32.mrf.mxu0
  %v1168 = vadd.f32 %v999, %v1167
  %1169 = vmatmul.bf16.gmra.mxu0 %v749
  %v1170 = vpop.f32.mrf.mxu0
  %v1171 = vadd.f32 %v1002, %v1170
  %v1172 = vpop.f32.mrf.mxu0
  %v1173 = vadd.f32 %v1004, %v1172
  %1174 = vmatmul.bf16.gmra.mxu0 %v751
  %v1175 = vpop.f32.mrf.mxu0
  %v1176 = vadd.f32 %v1007, %v1175
  %v1177 = vpop.f32.mrf.mxu0
  %v1178 = vadd.f32 %v1009, %v1177
  %1179 = vmatmul.bf16.gmra.mxu0 %v753
  %v1180 = vpop.f32.mrf.mxu0
  %v1181 = vadd.f32 %v1012, %v1180
  %v1182 = vpop.f32.mrf.mxu0
  %v1183 = vadd.f32 %v1014, %v1182
  %1184 = vmatmul.bf16.gmra.mxu0 %v755
  %v1185 = vpop.f32.mrf.mxu0
  %v1186 = vadd.f32 %v1017, %v1185
  %v1187 = vpop.f32.mrf.mxu0
  %v1188 = vadd.f32 %v1019, %v1187
  %1189 = vmatmul.bf16.gmra.mxu0 %v757
  %v1190 = vpop.f32.mrf.mxu0
  %v1191 = vadd.f32 %v1022, %v1190
  %v1192 = vpop.f32.mrf.mxu0
  %v1193 = vadd.f32 %v1024, %v1192
  %1194 = vmatmul.bf16.gmra.mxu0 %v759
  %v1195 = vpop.f32.mrf.mxu0
  %v1196 = vadd.f32 %v1027, %v1195
  %v1197 = vpop.f32.mrf.mxu0
  %v1198 = vadd.f32 %v1029, %v1197
  %1199 = vmatmul.bf16.gmra.mxu0 %v761
  %v1200 = vpop.f32.mrf.mxu0
  %v1201 = vadd.f32 %v1032, %v1200
  %v1202 = vpop.f32.mrf.mxu0
  %v1203 = vadd.f32 %v1034, %v1202
  %1204 = vmatmul.bf16.gmra.mxu0 %v763
  %v1205 = vpop.f32.mrf.mxu0
  %v1206 = vadd.f32 %v1037, %v1205
  %v1207 = vpop.f32.mrf.mxu0
  %v1208 = vadd.f32 %v1039, %v1207
  %1209 = vmatmul.bf16.gmra.mxu0 %v765
  %v1210 = vpop.f32.mrf.mxu0
  %v1211 = vadd.f32 %v1042, %v1210
  %v1212 = vpop.f32.mrf.mxu0
  %v1213 = vadd.f32 %v1044, %v1212
  %1214 = vmatmul.bf16.gmra.mxu0 %v767
  %v1215 = vpop.f32.mrf.mxu0
  %v1216 = vadd.f32 %v1047, %v1215
  %v1217 = vpop.f32.mrf.mxu0
  %v1218 = vadd.f32 %v1049, %v1217
  %1219 = vmatmul.bf16.gmra.mxu0 %v769
  %v1220 = vpop.f32.mrf.mxu0
  %v1221 = vadd.f32 %v1052, %v1220
  %v1222 = vpop.f32.mrf.mxu0
  %v1223 = vadd.f32 %v1054, %v1222
  %1224 = vmatmul.bf16.gmra.mxu0 %v771
  %v1225 = vpop.f32.mrf.mxu0
  %v1226 = vadd.f32 %v1057, %v1225
  %v1227 = vpop.f32.mrf.mxu0
  %v1228 = vadd.f32 %v1059, %v1227
  %1229 = vmatmul.bf16.gmra.mxu0 %v773
  %v1230 = vpop.f32.mrf.mxu0
  %v1231 = vadd.f32 %v1062, %v1230
  %v1232 = vpop.f32.mrf.mxu0
  %v1233 = vadd.f32 %v1064, %v1232
  %1234 = vmatmul.bf16.gmra.mxu0 %v775
  %v1235 = vpop.f32.mrf.mxu0
  %v1236 = vadd.f32 %v1067, %v1235
  %v1237 = vpop.f32.mrf.mxu0
  %v1238 = vadd.f32 %v1069, %v1237
  %1239 = vmatmul.bf16.gmra.mxu0 %v777
  %v1240 = vpop.f32.mrf.mxu0
  %v1241 = vadd.f32 %v1072, %v1240
  %v1242 = vpop.f32.mrf.mxu0
  %v1243 = vadd.f32 %v1074, %v1242
  %1244 = vmatmul.bf16.gmra.mxu0 %v779
  %v1245 = vpop.f32.mrf.mxu0
  %v1246 = vadd.f32 %v1077, %v1245
  %v1247 = vpop.f32.mrf.mxu0
  %v1248 = vadd.f32 %v1079, %v1247
  %1249 = vdwg.mxu0
  %v1250 = vtanh.pop %v1091
  %v1251 = vtanh.pop %v1093
  %v1252 = vtanh.pop %v1096
  %v1253 = vtanh.pop %v1098
  %v1254 = vtanh.pop %v1101
  %v1255 = vtanh.pop %v1103
  %v1256 = vtanh.pop %v1106
  %v1257 = vtanh.pop %v1108
  %v1258 = vtanh.pop %v1111
  %v1259 = vtanh.pop %v1113
  %v1260 = vtanh.pop %v1116
  %v1261 = vtanh.pop %v1118
  %v1262 = vtanh.pop %v1121
  %v1263 = vtanh.pop %v1123
  %v1264 = vtanh.pop %v1126
  %v1265 = vtanh.pop %v1128
  %v1266 = vtanh.pop %v1131
  %v1267 = vtanh.pop %v1133
  %v1268 = vtanh.pop %v1136
  %v1269 = vtanh.pop %v1138
  %v1270 = vtanh.pop %v1141
  %v1271 = vtanh.pop %v1143
  %v1272 = vtanh.pop %v1146
  %v1273 = vtanh.pop %v1148
  %v1274 = vtanh.pop %v1151
  %v1275 = vtanh.pop %v1153
  %v1276 = vtanh.pop %v1156
  %v1277 = vtanh.pop %v1158
  %v1278 = vtanh.pop %v1161
  %v1279 = vtanh.pop %v1163
  %v1280 = vtanh.pop %v1166
  %v1281 = vtanh.pop %v1168
  %v1282 = vtanh.pop %v1171
  %v1283 = vtanh.pop %v1173
  %v1284 = vtanh.pop %v1176
  %v1285 = vtanh.pop %v1178
  %v1286 = vtanh.pop %v1181
  %v1287 = vtanh.pop %v1183
  %v1288 = vtanh.pop %v1186
  %v1289 = vtanh.pop %v1188
  %v1290 = vtanh.pop %v1191
  %v1291 = vtanh.pop %v1193
  %v1292 = vtanh.pop %v1196
  %v1293 = vtanh.pop %v1198
  %v1294 = vtanh.pop %v1201
  %v1295 = vtanh.pop %v1203
  %v1296 = vtanh.pop %v1206
  %v1297 = vtanh.pop %v1208
  %v1298 = vtanh.pop %v1211
  %v1299 = vtanh.pop %v1213
  %v1300 = vtanh.pop %v1216
  %v1301 = vtanh.pop %v1218
  %v1302 = vtanh.pop %v1221
  %v1303 = vtanh.pop %v1223
  %v1304 = vtanh.pop %v1226
  %v1305 = vtanh.pop %v1228
  %v1306 = vtanh.pop %v1231
  %v1307 = vtanh.pop %v1233
  %v1308 = vtanh.pop %v1236
  %v1309 = vtanh.pop %v1238
  %v1310 = vtanh.pop %v1241
  %v1311 = vtanh.pop %v1243
  %v1312 = vtanh.pop %v1246
  %v1313 = vtanh.pop %v1248
  %v1314 = vpack.c.bf16 %v1251, %v1250
  %v1315 = vpack.c.bf16 %v1253, %v1252
  %v1316 = vpack.c.bf16 %v1255, %v1254
  %v1317 = vpack.c.bf16 %v1257, %v1256
  %v1318 = vpack.c.bf16 %v1259, %v1258
  %v1319 = vpack.c.bf16 %v1261, %v1260
  %v1320 = vpack.c.bf16 %v1263, %v1262
  %v1321 = vpack.c.bf16 %v1265, %v1264
  %v1322 = vpack.c.bf16 %v1267, %v1266
  %v1323 = vpack.c.bf16 %v1269, %v1268
  %v1324 = vpack.c.bf16 %v1271, %v1270
  %v1325 = vpack.c.bf16 %v1273, %v1272
  %v1326 = vpack.c.bf16 %v1275, %v1274
  %v1327 = vpack.c.bf16 %v1277, %v1276
  %v1328 = vpack.c.bf16 %v1279, %v1278
  %v1329 = vpack.c.bf16 %v1281, %v1280
  %v1330 = vpack.c.bf16 %v1283, %v1282
  %v1331 = vpack.c.bf16 %v1285, %v1284
  %v1332 = vpack.c.bf16 %v1287, %v1286
  %v1333 = vpack.c.bf16 %v1289, %v1288
  %v1334 = vpack.c.bf16 %v1291, %v1290
  %v1335 = vpack.c.bf16 %v1293, %v1292
  %v1336 = vpack.c.bf16 %v1295, %v1294
  %v1337 = vpack.c.bf16 %v1297, %v1296
  %v1338 = vpack.c.bf16 %v1299, %v1298
  %v1339 = vpack.c.bf16 %v1301, %v1300
  %v1340 = vpack.c.bf16 %v1303, %v1302
  %v1341 = vpack.c.bf16 %v1305, %v1304
  %v1342 = vpack.c.bf16 %v1307, %v1306
  %v1343 = vpack.c.bf16 %v1309, %v1308
  %v1344 = vpack.c.bf16 %v1311, %v1310
  %v1345 = vpack.c.bf16 %v1313, %v1312
  %v1346 = vld [vmem:[%s5] sm:$0xf]
  %v1347 = vld [vmem:[%s5 + $0x4] sm:$0xf]
  %v1348 = vld [vmem:[%s5 + $0x8] sm:$0xf]
  %v1349 = vld [vmem:[%s5 + $0xc] sm:$0xf]
  %v1350 = vld [vmem:[%s5 + $0x10] sm:$0xf]
  %v1351 = vld [vmem:[%s5 + $0x14] sm:$0xf]
  %v1352 = vld [vmem:[%s5 + $0x18] sm:$0xf]
  %v1353 = vld [vmem:[%s5 + $0x1c] sm:$0xf]
  %v1354 = vld [vmem:[%s5 + $0x20] sm:$0xf]
  %v1355 = vld [vmem:[%s5 + $0x24] sm:$0xf]
  %v1356 = vld [vmem:[%s5 + $0x28] sm:$0xf]
  %v1357 = vld [vmem:[%s5 + $0x2c] sm:$0xf]
  %v1358 = vld [vmem:[%s5 + $0x30] sm:$0xf]
  %v1359 = vld [vmem:[%s5 + $0x34] sm:$0xf]
  %v1360 = vld [vmem:[%s5 + $0x38] sm:$0xf]
  %v1361 = vld [vmem:[%s5 + $0x3c] sm:$0xf]
  %v1362 = vld [vmem:[%s6] sm:$0x1]
  %v1364 = vperm.slane %v1362, 0
  %v1382 = vunpack.c.l.b16 %v1346
  %v1383 = vunpack.c.l.b16 %v1347
  %v1384 = vunpack.c.l.b16 %v1348
  %v1385 = vunpack.c.l.b16 %v1349
  %v1386 = vunpack.c.l.b16 %v1350
  %v1387 = vunpack.c.l.b16 %v1351
  %v1388 = vunpack.c.l.b16 %v1352
  %v1389 = vunpack.c.l.b16 %v1353
  %v1390 = vunpack.c.l.b16 %v1354
  %v1391 = vunpack.c.l.b16 %v1355
  %v1392 = vunpack.c.l.b16 %v1356
  %v1393 = vunpack.c.l.b16 %v1357
  %v1394 = vunpack.c.l.b16 %v1358
  %v1395 = vunpack.c.l.b16 %v1359
  %v1396 = vunpack.c.l.b16 %v1360
  %v1397 = vunpack.c.l.b16 %v1361
  %v1398 = vpack.c.b16 %v1383, %v1382
  %v1399 = vpack.c.b16 %v1385, %v1384
  %v1400 = vpack.c.b16 %v1387, %v1386
  %v1401 = vpack.c.b16 %v1389, %v1388
  %v1402 = vpack.c.b16 %v1391, %v1390
  %v1403 = vpack.c.b16 %v1393, %v1392
  %v1404 = vpack.c.b16 %v1395, %v1394
  %v1405 = vpack.c.b16 %v1397, %v1396
  %1414 = vmatpush.bf16.msra.mxu0 %v1405
  %1415 = vmatpush.bf16.msra.mxu0 %v1404
  %1416 = vmatpush.bf16.msra.mxu0 %v1403
  %1417 = vmatpush.bf16.msra.mxu0 %v1402
  %1418 = vmatpush.bf16.msra.mxu0 %v1401
  %1419 = vmatpush.bf16.msra.mxu0 %v1400
  %1420 = vmatpush.bf16.msra.mxu0 %v1399
  %1421 = vmatpush.bf16.msra.mxu0 %v1398
  %1422 = vmatmul.bf16.gmra.mxu0 %v1314
  %v1423 = vpop.f32.mrf.mxu0
  %v1424 = vadd.f32 %v1364, %v1423
  %v1425 = vpop.f32.mrf.mxu0
  %v1426 = vadd.f32 %v1364, %v1425
  %1427 = vmatmul.bf16.gmra.mxu0 %v1315
  %v1428 = vpop.f32.mrf.mxu0
  %v1429 = vadd.f32 %v1364, %v1428
  %v1430 = vpop.f32.mrf.mxu0
  %v1431 = vadd.f32 %v1364, %v1430
  %1432 = vmatmul.bf16.gmra.mxu0 %v1316
  %v1433 = vpop.f32.mrf.mxu0
  %v1434 = vadd.f32 %v1364, %v1433
  %v1435 = vpop.f32.mrf.mxu0
  %v1436 = vadd.f32 %v1364, %v1435
  %1437 = vmatmul.bf16.gmra.mxu0 %v1317
  %v1438 = vpop.f32.mrf.mxu0
  %v1439 = vadd.f32 %v1364, %v1438
  %v1440 = vpop.f32.mrf.mxu0
  %v1441 = vadd.f32 %v1364, %v1440
  %1442 = vmatmul.bf16.gmra.mxu0 %v1318
  %v1443 = vpop.f32.mrf.mxu0
  %v1444 = vadd.f32 %v1364, %v1443
  %v1445 = vpop.f32.mrf.mxu0
  %v1446 = vadd.f32 %v1364, %v1445
  %1447 = vmatmul.bf16.gmra.mxu0 %v1319
  %v1448 = vpop.f32.mrf.mxu0
  %v1449 = vadd.f32 %v1364, %v1448
  %v1450 = vpop.f32.mrf.mxu0
  %v1451 = vadd.f32 %v1364, %v1450
  %1452 = vmatmul.bf16.gmra.mxu0 %v1320
  %v1453 = vpop.f32.mrf.mxu0
  %v1454 = vadd.f32 %v1364, %v1453
  %v1455 = vpop.f32.mrf.mxu0
  %v1456 = vadd.f32 %v1364, %v1455
  %1457 = vmatmul.bf16.gmra.mxu0 %v1321
  %v1458 = vpop.f32.mrf.mxu0
  %v1459 = vadd.f32 %v1364, %v1458
  %v1460 = vpop.f32.mrf.mxu0
  %v1461 = vadd.f32 %v1364, %v1460
  %1462 = vmatmul.bf16.gmra.mxu0 %v1322
  %v1463 = vpop.f32.mrf.mxu0
  %v1464 = vadd.f32 %v1364, %v1463
  %v1465 = vpop.f32.mrf.mxu0
  %v1466 = vadd.f32 %v1364, %v1465
  %1467 = vmatmul.bf16.gmra.mxu0 %v1323
  %v1468 = vpop.f32.mrf.mxu0
  %v1469 = vadd.f32 %v1364, %v1468
  %v1470 = vpop.f32.mrf.mxu0
  %v1471 = vadd.f32 %v1364, %v1470
  %1472 = vmatmul.bf16.gmra.mxu0 %v1324
  %v1473 = vpop.f32.mrf.mxu0
  %v1474 = vadd.f32 %v1364, %v1473
  %v1475 = vpop.f32.mrf.mxu0
  %v1476 = vadd.f32 %v1364, %v1475
  %1477 = vmatmul.bf16.gmra.mxu0 %v1325
  %v1478 = vpop.f32.mrf.mxu0
  %v1479 = vadd.f32 %v1364, %v1478
  %v1480 = vpop.f32.mrf.mxu0
  %v1481 = vadd.f32 %v1364, %v1480
  %1482 = vmatmul.bf16.gmra.mxu0 %v1326
  %v1483 = vpop.f32.mrf.mxu0
  %v1484 = vadd.f32 %v1364, %v1483
  %v1485 = vpop.f32.mrf.mxu0
  %v1486 = vadd.f32 %v1364, %v1485
  %1487 = vmatmul.bf16.gmra.mxu0 %v1327
  %v1488 = vpop.f32.mrf.mxu0
  %v1489 = vadd.f32 %v1364, %v1488
  %v1490 = vpop.f32.mrf.mxu0
  %v1491 = vadd.f32 %v1364, %v1490
  %1492 = vmatmul.bf16.gmra.mxu0 %v1328
  %v1493 = vpop.f32.mrf.mxu0
  %v1494 = vadd.f32 %v1364, %v1493
  %v1495 = vpop.f32.mrf.mxu0
  %v1496 = vadd.f32 %v1364, %v1495
  %1497 = vmatmul.bf16.gmra.mxu0 %v1329
  %v1498 = vpop.f32.mrf.mxu0
  %v1499 = vadd.f32 %v1364, %v1498
  %v1500 = vpop.f32.mrf.mxu0
  %v1501 = vadd.f32 %v1364, %v1500
  %1502 = vmatmul.bf16.gmra.mxu0 %v1330
  %v1503 = vpop.f32.mrf.mxu0
  %v1504 = vadd.f32 %v1364, %v1503
  %v1505 = vpop.f32.mrf.mxu0
  %v1506 = vadd.f32 %v1364, %v1505
  %1507 = vmatmul.bf16.gmra.mxu0 %v1331
  %v1508 = vpop.f32.mrf.mxu0
  %v1509 = vadd.f32 %v1364, %v1508
  %v1510 = vpop.f32.mrf.mxu0
  %v1511 = vadd.f32 %v1364, %v1510
  %1512 = vmatmul.bf16.gmra.mxu0 %v1332
  %v1513 = vpop.f32.mrf.mxu0
  %v1514 = vadd.f32 %v1364, %v1513
  %v1515 = vpop.f32.mrf.mxu0
  %v1516 = vadd.f32 %v1364, %v1515
  %1517 = vmatmul.bf16.gmra.mxu0 %v1333
  %v1518 = vpop.f32.mrf.mxu0
  %v1519 = vadd.f32 %v1364, %v1518
  %v1520 = vpop.f32.mrf.mxu0
  %v1521 = vadd.f32 %v1364, %v1520
  %1522 = vmatmul.bf16.gmra.mxu0 %v1334
  %v1523 = vpop.f32.mrf.mxu0
  %v1524 = vadd.f32 %v1364, %v1523
  %v1525 = vpop.f32.mrf.mxu0
  %v1526 = vadd.f32 %v1364, %v1525
  %1527 = vmatmul.bf16.gmra.mxu0 %v1335
  %v1528 = vpop.f32.mrf.mxu0
  %v1529 = vadd.f32 %v1364, %v1528
  %v1530 = vpop.f32.mrf.mxu0
  %v1531 = vadd.f32 %v1364, %v1530
  %1532 = vmatmul.bf16.gmra.mxu0 %v1336
  %v1533 = vpop.f32.mrf.mxu0
  %v1534 = vadd.f32 %v1364, %v1533
  %v1535 = vpop.f32.mrf.mxu0
  %v1536 = vadd.f32 %v1364, %v1535
  %1537 = vmatmul.bf16.gmra.mxu0 %v1337
  %v1538 = vpop.f32.mrf.mxu0
  %v1539 = vadd.f32 %v1364, %v1538
  %v1540 = vpop.f32.mrf.mxu0
  %v1541 = vadd.f32 %v1364, %v1540
  %1542 = vmatmul.bf16.gmra.mxu0 %v1338
  %v1543 = vpop.f32.mrf.mxu0
  %v1544 = vadd.f32 %v1364, %v1543
  %v1545 = vpop.f32.mrf.mxu0
  %v1546 = vadd.f32 %v1364, %v1545
  %1547 = vmatmul.bf16.gmra.mxu0 %v1339
  %v1548 = vpop.f32.mrf.mxu0
  %v1549 = vadd.f32 %v1364, %v1548
  %v1550 = vpop.f32.mrf.mxu0
  %v1551 = vadd.f32 %v1364, %v1550
  %1552 = vmatmul.bf16.gmra.mxu0 %v1340
  %v1553 = vpop.f32.mrf.mxu0
  %v1554 = vadd.f32 %v1364, %v1553
  %v1555 = vpop.f32.mrf.mxu0
  %v1556 = vadd.f32 %v1364, %v1555
  %1557 = vmatmul.bf16.gmra.mxu0 %v1341
  %v1558 = vpop.f32.mrf.mxu0
  %v1559 = vadd.f32 %v1364, %v1558
  %v1560 = vpop.f32.mrf.mxu0
  %v1561 = vadd.f32 %v1364, %v1560
  %1562 = vmatmul.bf16.gmra.mxu0 %v1342
  %v1563 = vpop.f32.mrf.mxu0
  %v1564 = vadd.f32 %v1364, %v1563
  %v1565 = vpop.f32.mrf.mxu0
  %v1566 = vadd.f32 %v1364, %v1565
  %1567 = vmatmul.bf16.gmra.mxu0 %v1343
  %v1568 = vpop.f32.mrf.mxu0
  %v1569 = vadd.f32 %v1364, %v1568
  %v1570 = vpop.f32.mrf.mxu0
  %v1571 = vadd.f32 %v1364, %v1570
  %1572 = vmatmul.bf16.gmra.mxu0 %v1344
  %v1573 = vpop.f32.mrf.mxu0
  %v1574 = vadd.f32 %v1364, %v1573
  %v1575 = vpop.f32.mrf.mxu0
  %v1576 = vadd.f32 %v1364, %v1575
  %1577 = vmatmul.bf16.gmra.mxu0 %v1345
  %v1578 = vpop.f32.mrf.mxu0
  %v1579 = vadd.f32 %v1364, %v1578
  %v1580 = vpop.f32.mrf.mxu0
  %v1581 = vadd.f32 %v1364, %v1580
  %1582 = vdwg.mxu0
  %vm1583 = vcmask 130048
  %1584 = vst.msk [vmem:[%s7] sm:$0xff] %vm1583, %v1424
  %1585 = vst.msk [vmem:[%s7 + $0x8] sm:$0xff] %vm1583, %v1426
  %1586 = vst.msk [vmem:[%s7 + $0x10] sm:$0xff] %vm1583, %v1429
  %1587 = vst.msk [vmem:[%s7 + $0x18] sm:$0xff] %vm1583, %v1431
  %1588 = vst.msk [vmem:[%s7 + $0x20] sm:$0xff] %vm1583, %v1434
  %1589 = vst.msk [vmem:[%s7 + $0x28] sm:$0xff] %vm1583, %v1436
  %1590 = vst.msk [vmem:[%s7 + $0x30] sm:$0xff] %vm1583, %v1439
  %1591 = vst.msk [vmem:[%s7 + $0x38] sm:$0xff] %vm1583, %v1441
  %1592 = vst.msk [vmem:[%s7 + $0x40] sm:$0xff] %vm1583, %v1444
  %1593 = vst.msk [vmem:[%s7 + $0x48] sm:$0xff] %vm1583, %v1446
  %1594 = vst.msk [vmem:[%s7 + $0x50] sm:$0xff] %vm1583, %v1449
  %1595 = vst.msk [vmem:[%s7 + $0x58] sm:$0xff] %vm1583, %v1451
  %1596 = vst.msk [vmem:[%s7 + $0x60] sm:$0xff] %vm1583, %v1454
  %1597 = vst.msk [vmem:[%s7 + $0x68] sm:$0xff] %vm1583, %v1456
  %1598 = vst.msk [vmem:[%s7 + $0x70] sm:$0xff] %vm1583, %v1459
  %1599 = vst.msk [vmem:[%s7 + $0x78] sm:$0xff] %vm1583, %v1461
  %1600 = vst.msk [vmem:[%s7 + $0x80] sm:$0xff] %vm1583, %v1464
  %1601 = vst.msk [vmem:[%s7 + $0x88] sm:$0xff] %vm1583, %v1466
  %1602 = vst.msk [vmem:[%s7 + $0x90] sm:$0xff] %vm1583, %v1469
  %1603 = vst.msk [vmem:[%s7 + $0x98] sm:$0xff] %vm1583, %v1471
  %1604 = vst.msk [vmem:[%s7 + $0xa0] sm:$0xff] %vm1583, %v1474
  %1605 = vst.msk [vmem:[%s7 + $0xa8] sm:$0xff] %vm1583, %v1476
  %1606 = vst.msk [vmem:[%s7 + $0xb0] sm:$0xff] %vm1583, %v1479
  %1607 = vst.msk [vmem:[%s7 + $0xb8] sm:$0xff] %vm1583, %v1481
  %1608 = vst.msk [vmem:[%s7 + $0xc0] sm:$0xff] %vm1583, %v1484
  %1609 = vst.msk [vmem:[%s7 + $0xc8] sm:$0xff] %vm1583, %v1486
  %1610 = vst.msk [vmem:[%s7 + $0xd0] sm:$0xff] %vm1583, %v1489
  %1611 = vst.msk [vmem:[%s7 + $0xd8] sm:$0xff] %vm1583, %v1491
  %1612 = vst.msk [vmem:[%s7 + $0xe0] sm:$0xff] %vm1583, %v1494
  %1613 = vst.msk [vmem:[%s7 + $0xe8] sm:$0xff] %vm1583, %v1496
  %1614 = vst.msk [vmem:[%s7 + $0xf0] sm:$0xff] %vm1583, %v1499
  %1615 = vst.msk [vmem:[%s7 + $0xf8] sm:$0xff] %vm1583, %v1501
  %1616 = vst.msk [vmem:[%s7 + $0x100] sm:$0xff] %vm1583, %v1504
  %1617 = vst.msk [vmem:[%s7 + $0x108] sm:$0xff] %vm1583, %v1506
  %1618 = vst.msk [vmem:[%s7 + $0x110] sm:$0xff] %vm1583, %v1509
  %1619 = vst.msk [vmem:[%s7 + $0x118] sm:$0xff] %vm1583, %v1511
  %1620 = vst.msk [vmem:[%s7 + $0x120] sm:$0xff] %vm1583, %v1514
  %1621 = vst.msk [vmem:[%s7 + $0x128] sm:$0xff] %vm1583, %v1516
  %1622 = vst.msk [vmem:[%s7 + $0x130] sm:$0xff] %vm1583, %v1519
  %1623 = vst.msk [vmem:[%s7 + $0x138] sm:$0xff] %vm1583, %v1521
  %1624 = vst.msk [vmem:[%s7 + $0x140] sm:$0xff] %vm1583, %v1524
  %1625 = vst.msk [vmem:[%s7 + $0x148] sm:$0xff] %vm1583, %v1526
  %1626 = vst.msk [vmem:[%s7 + $0x150] sm:$0xff] %vm1583, %v1529
  %1627 = vst.msk [vmem:[%s7 + $0x158] sm:$0xff] %vm1583, %v1531
  %1628 = vst.msk [vmem:[%s7 + $0x160] sm:$0xff] %vm1583, %v1534
  %1629 = vst.msk [vmem:[%s7 + $0x168] sm:$0xff] %vm1583, %v1536
  %1630 = vst.msk [vmem:[%s7 + $0x170] sm:$0xff] %vm1583, %v1539
  %1631 = vst.msk [vmem:[%s7 + $0x178] sm:$0xff] %vm1583, %v1541
  %1632 = vst.msk [vmem:[%s7 + $0x180] sm:$0xff] %vm1583, %v1544
  %1633 = vst.msk [vmem:[%s7 + $0x188] sm:$0xff] %vm1583, %v1546
  %1634 = vst.msk [vmem:[%s7 + $0x190] sm:$0xff] %vm1583, %v1549
  %1635 = vst.msk [vmem:[%s7 + $0x198] sm:$0xff] %vm1583, %v1551
  %1636 = vst.msk [vmem:[%s7 + $0x1a0] sm:$0xff] %vm1583, %v1554
  %1637 = vst.msk [vmem:[%s7 + $0x1a8] sm:$0xff] %vm1583, %v1556
  %1638 = vst.msk [vmem:[%s7 + $0x1b0] sm:$0xff] %vm1583, %v1559
  %1639 = vst.msk [vmem:[%s7 + $0x1b8] sm:$0xff] %vm1583, %v1561
  %1640 = vst.msk [vmem:[%s7 + $0x1c0] sm:$0xff] %vm1583, %v1564
  %1641 = vst.msk [vmem:[%s7 + $0x1c8] sm:$0xff] %vm1583, %v1566
  %1642 = vst.msk [vmem:[%s7 + $0x1d0] sm:$0xff] %vm1583, %v1569
  %1643 = vst.msk [vmem:[%s7 + $0x1d8] sm:$0xff] %vm1583, %v1571
  %1644 = vst.msk [vmem:[%s7 + $0x1e0] sm:$0xff] %vm1583, %v1574
  %1645 = vst.msk [vmem:[%s7 + $0x1e8] sm:$0xff] %vm1583, %v1576
  %1646 = vst.msk [vmem:[%s7 + $0x1f0] sm:$0xff] %vm1583, %v1579
  %1647 = vst.msk [vmem:[%s7 + $0x1f8] sm:$0xff] %vm1583, %v1581
  // Predicated region
  $region30: #{tpu_custom_call.1} parent=0 // pred_check
    _
  $region31: #{tpu_custom_call.1} parent=0 // pred_check_branch
    %1649 = sbr.rel (0) target = $region33
  $region32: #{tpu_custom_call.1} parent=0 // pred_region
    _
  $region33: #{tpu_custom_call.1} parent=0 // pred_fallthru
    _
  // Predicated region
  $region34: #{tpu_custom_call.1} parent=0 // pred_check
    _
  $region35: #{tpu_custom_call.1} parent=0 // pred_check_branch
    %1651 = sbr.rel (0) target = $region37
  $region36: #{tpu_custom_call.1} parent=0 // pred_region
    _
  $region37: #{tpu_custom_call.1} parent=0 // pred_fallthru
    _

</llo_original>
